<compile_context>
chip_gen: v5e
topology: v5e:2x2
jax: 0.10.0
libtpu: 0.0.40
codegen_flags: <defaults>
</compile_context>

<pallas_src>
import functools

import jax
import jax.numpy as jnp
from jax.experimental import pallas as pl
from jax.experimental.pallas import tpu as pltpu

LATENT_DIM = 8
DIR_DIM = 3
IN_DIM = LATENT_DIM + 2 * DIR_DIM   # 14
HIDDEN_DIM = 64
MID_DIM = 6
OUT_DIM = 3

# Bias slab layout (rows of a (BIAS_ROWS, 1) f32 array); all offsets 8-aligned.
_B1_OFF = 0
_B2_OFF = HIDDEN_DIM
_B3_OFF = 2 * HIDDEN_DIM
_B4_OFF = 3 * HIDDEN_DIM            # 192
_B5_OFF = 3 * HIDDEN_DIM + 8        # 200
BIAS_ROWS = 3 * HIDDEN_DIM + 16     # 208


def _round_up(x, m):
    return ((x + m - 1) // m) * m


def _texture_decoder_kernel(z_ref, w1_ref, w23_ref, w4_ref, w5_ref, b_ref, o_ref):
    """Fused transposed MLP: h = W @ h, batch on lanes, bf16 MXU / f32 accum."""
    bf16 = jnp.bfloat16
    f32 = jnp.float32

    z = z_ref[...]                                      # (14, TM) bf16

    w1 = w1_ref[...]                                    # (64, 14) bf16
    w2 = w23_ref[0:HIDDEN_DIM, :]                       # (64, 64) bf16
    w3 = w23_ref[HIDDEN_DIM:2 * HIDDEN_DIM, :]          # (64, 64) bf16
    w4 = w4_ref[...]                                    # (6, 64)  bf16
    w5 = w5_ref[...]                                    # (3, 6)   bf16

    b1 = b_ref[_B1_OFF:_B1_OFF + HIDDEN_DIM, :]         # (64, 1) f32
    b2 = b_ref[_B2_OFF:_B2_OFF + HIDDEN_DIM, :]
    b3 = b_ref[_B3_OFF:_B3_OFF + HIDDEN_DIM, :]
    b4 = b_ref[_B4_OFF:_B4_OFF + MID_DIM, :]            # (6, 1) f32
    b5 = b_ref[_B5_OFF:_B5_OFF + OUT_DIM, :]            # (3, 1) f32

    # Layers 1-4: MXU matmul with f32 accumulation + bias (f32), then ReLU on
    # packed bf16 (halves elementwise vreg count on v6e/v7x; correct on v5e).
    h = jnp.dot(w1, z, preferred_element_type=f32) + b1          # (64, TM)
    h = jnp.maximum(h.astype(bf16), 0.0)
    h = jnp.dot(w2, h, preferred_element_type=f32) + b2          # (64, TM)
    h = jnp.maximum(h.astype(bf16), 0.0)
    h = jnp.dot(w3, h, preferred_element_type=f32) + b3          # (64, TM)
    h = jnp.maximum(h.astype(bf16), 0.0)
    h = jnp.dot(w4, h, preferred_element_type=f32) + b4          # (6, TM)
    h = jnp.maximum(h.astype(bf16), 0.0)
    # Layer 5 (no activation): lane-dense (3, TM) store.
    h = jnp.dot(w5, h, preferred_element_type=f32) + b5          # (3, TM)
    o_ref[...] = h.astype(o_ref.dtype)


def init_texture_decoder_params(key, latent_dim=LATENT_DIM, hidden_dim=HIDDEN_DIM):
    """PyTorch-layout params: weight (out, in), bias (out,), default Linear init."""
    dims = [(latent_dim + 2 * DIR_DIM, hidden_dim),
            (hidden_dim, hidden_dim),
            (hidden_dim, hidden_dim),
            (hidden_dim, MID_DIM),
            (MID_DIM, OUT_DIM)]
    params = []
    for fin, fout in dims:
        kw, kb, key = jax.random.split(key, 3)
        bound = 1.0 / (float(fin) ** 0.5)
        w = jax.random.uniform(kw, (fout, fin), jnp.float32, -bound, bound)
        b = jax.random.uniform(kb, (fout,), jnp.float32, -bound, bound)
        params.append((w, b))
    return params


def _pick_block_m(n_pad, block_m):
    block_m = max(128, _round_up(block_m, 128))
    bm = min(block_m, n_pad)
    # v7x has 2 TensorCores/chip: keep the "parallel" grid axis at >= 2 steps
    # whenever there are enough rows so both cores get work.
    if n_pad >= 256:
        bm = min(bm, _round_up(pl.cdiv(n_pad, 2), 128))
    return bm


@functools.partial(jax.jit, static_argnames=("block_m",))
def texture_decoder_forward(x, w_i, w_o, params, block_m=2048):
    """x: [N, latent_dim], w_i/w_o: [N, 3] -> [N, 3] f32 (bf16 MXU, f32 accum).

    Note: matmuls run in bf16 (weights pre-cast, activations cast in-kernel);
    accuracy vs an f32 reference is ~1e-2 relative — an intentional trade-off.
    """
    n = x.shape[0]
    assert x.shape == (n, LATENT_DIM)
    assert w_i.shape == (n, DIR_DIM) and w_o.shape == (n, DIR_DIM)

    (w1, b1), (w2, b2), (w3, b3), (w4, b4), (w5, b5) = params
    assert w1.shape == (HIDDEN_DIM, IN_DIM)   # PyTorch (out, in) layout

    bf16 = jnp.bfloat16
    n_pad = _round_up(max(n, 1), 128)
    bm = _pick_block_m(n_pad, block_m)
    num_blocks = pl.cdiv(n_pad, bm)

    # Batch-on-lanes input slab (14, N_pad) bf16: concat + transpose + cast +
    # pad happen in one wrapper fusion; the kernel then reads 28 B/row.
    z_t = jnp.concatenate([x, w_i, w_o], axis=-1).astype(bf16).T
    if n_pad != n:
        z_t = jnp.pad(z_t, ((0, 0), (0, n_pad - n)))

    # Consolidated parameter inputs (6 kernel inputs instead of 15).
    w1_b = w1.astype(bf16)                                    # (64, 14)
    w23_b = jnp.concatenate([w2, w3], axis=0).astype(bf16)    # (128, 64)
    w4_b = w4.astype(bf16)                                    # (6, 64)
    w5_b = w5.astype(bf16)                                    # (3, 6)

    def _col(v, rows):
        v = v.reshape(-1, 1).astype(jnp.float32)
        return jnp.pad(v, ((0, rows - v.shape[0]), (0, 0)))

    bias_slab = jnp.concatenate(
        [_col(b1, HIDDEN_DIM), _col(b2, HIDDEN_DIM), _col(b3, HIDDEN_DIM),
         _col(b4, 8), _col(b5, 8)], axis=0)                   # (208, 1) f32

    flops = 2 * n_pad * (IN_DIM * HIDDEN_DIM + 2 * HIDDEN_DIM * HIDDEN_DIM
                         + HIDDEN_DIM * MID_DIM + MID_DIM * OUT_DIM)
    param_bytes = sum(int(p.size) * p.dtype.itemsize
                      for p in (w1_b, w23_b, w4_b, w5_b, bias_slab))
    bytes_accessed = n_pad * (IN_DIM * 2 + OUT_DIM * 4) + param_bytes
    cost = pl.CostEstimate(flops=flops, transcendentals=0,
                           bytes_accessed=bytes_accessed)

    row_spec = pl.BlockSpec((IN_DIM, bm), lambda i: (0, i))
    # Params are tiny and grid-invariant: full block, constant index map.
    param_specs = [
        pl.BlockSpec((HIDDEN_DIM, IN_DIM), lambda i: (0, 0)),
        pl.BlockSpec((2 * HIDDEN_DIM, HIDDEN_DIM), lambda i: (0, 0)),
        pl.BlockSpec((MID_DIM, HIDDEN_DIM), lambda i: (0, 0)),
        pl.BlockSpec((OUT_DIM, MID_DIM), lambda i: (0, 0)),
        pl.BlockSpec((BIAS_ROWS, 1), lambda i: (0, 0)),
    ]
    out_spec = pl.BlockSpec((OUT_DIM, bm), lambda i: (0, i))

    out_t = pl.pallas_call(
        _texture_decoder_kernel,
        out_shape=jax.ShapeDtypeStruct((OUT_DIM, n_pad), jnp.float32),
        grid_spec=pltpu.PrefetchScalarGridSpec(
            num_scalar_prefetch=0,
            grid=(num_blocks,),
            in_specs=[row_spec] + param_specs,
            out_specs=out_spec,
        ),
        compiler_params=pltpu.CompilerParams(
            dimension_semantics=("parallel",)),
        cost_estimate=cost,
    )(z_t, w1_b, w23_b, w4_b, w5_b, bias_slab)

    # Lane-dense (3, N) kernel output -> caller-facing (N, 3): 12 B/row.
    return out_t[:, :n].T


def _reference_forward(x, w_i, w_o, params):
    """Pure-JAX f32 reference matching the PyTorch forward."""
    z = jnp.concatenate([x, w_i, w_o], axis=-1)
    for i, (w, b) in enumerate(params):
        z = z @ w.T + b
        if i < len(params) - 1:
            z = jnp.maximum(z, 0.0)
    return z


if __name__ == "__main__":
    key = jax.random.PRNGKey(0)
    kp, kx, ki, ko = jax.random.split(key, 4)

    params = init_texture_decoder_params(kp)

    N = 300  # not a multiple of 128 -> exercises padding + ragged last block
    x = jax.random.normal(kx, (N, LATENT_DIM), jnp.float32)
    w_i = jax.random.normal(ki, (N, DIR_DIM), jnp.float32)
    w_o = jax.random.normal(ko, (N, DIR_DIM), jnp.float32)

    out = texture_decoder_forward(x, w_i, w_o, params)
    out = jax.block_until_ready(out)

    ref = _reference_forward(x, w_i, w_o, params)
    assert out.shape == (N, OUT_DIM)
    # bf16 matmuls with f32 accumulation -> relaxed tolerance vs f32 reference.
    assert jnp.allclose(out, ref, atol=5e-2, rtol=5e-2), "mismatch vs reference"

    print("KERNEL_OK")
</pallas_src>

<mosaic_0001>
module attributes {stable_mosaic.version = 11 : i64} {
  func.func @_texture_decoder_kernel(%arg0: i32, %arg1: memref<14x256xbf16, #tpu.memory_space<vmem>>, %arg2: memref<64x14xbf16, #tpu.memory_space<vmem>>, %arg3: memref<128x64xbf16, #tpu.memory_space<vmem>>, %arg4: memref<6x64xbf16, #tpu.memory_space<vmem>>, %arg5: memref<3x6xbf16, #tpu.memory_space<vmem>>, %arg6: memref<208x1xf32, #tpu.memory_space<vmem>>, %arg7: memref<3x256xf32, #tpu.memory_space<vmem>>) attributes {dimension_semantics = [#tpu.dimension_semantics<parallel>], iteration_bounds = array<i64: 2>, scalar_prefetch = 0 : i64, scratch_operands = 0 : i64, tpu.core_type = #tpu.core_type<tc>, window_params = [{transform_indices = @transform_0, window_bounds = array<i64: 14, 256>}, {pipeline_mode = #tpu.pipeline_mode<synchronous>, transform_indices = @transform_1, window_bounds = array<i64: 64, 14>}, {pipeline_mode = #tpu.pipeline_mode<synchronous>, transform_indices = @transform_2, window_bounds = array<i64: 128, 64>}, {pipeline_mode = #tpu.pipeline_mode<synchronous>, transform_indices = @transform_3, window_bounds = array<i64: 6, 64>}, {pipeline_mode = #tpu.pipeline_mode<synchronous>, transform_indices = @transform_4, window_bounds = array<i64: 3, 6>}, {pipeline_mode = #tpu.pipeline_mode<synchronous>, transform_indices = @transform_5, window_bounds = array<i64: 208, 1>}, {transform_indices = @transform_6, window_bounds = array<i64: 3, 256>}]} {
    %c0 = arith.constant 0 : index
    %c0_0 = arith.constant 0 : index
    %0 = vector.load %arg1[%c0, %c0_0] : memref<14x256xbf16, #tpu.memory_space<vmem>>, vector<14x256xbf16>
    %c0_1 = arith.constant 0 : index
    %c0_2 = arith.constant 0 : index
    %1 = vector.load %arg2[%c0_1, %c0_2] : memref<64x14xbf16, #tpu.memory_space<vmem>>, vector<64x14xbf16>
    %c0_3 = arith.constant 0 : index
    %c0_4 = arith.constant 0 : index
    %2 = vector.load %arg3[%c0_3, %c0_4] : memref<128x64xbf16, #tpu.memory_space<vmem>>, vector<64x64xbf16>
    %c64 = arith.constant 64 : index
    %c0_5 = arith.constant 0 : index
    %3 = vector.load %arg3[%c64, %c0_5] : memref<128x64xbf16, #tpu.memory_space<vmem>>, vector<64x64xbf16>
    %c0_6 = arith.constant 0 : index
    %c0_7 = arith.constant 0 : index
    %4 = vector.load %arg4[%c0_6, %c0_7] : memref<6x64xbf16, #tpu.memory_space<vmem>>, vector<6x64xbf16>
    %c0_8 = arith.constant 0 : index
    %c0_9 = arith.constant 0 : index
    %5 = vector.load %arg5[%c0_8, %c0_9] : memref<3x6xbf16, #tpu.memory_space<vmem>>, vector<3x6xbf16>
    %c0_10 = arith.constant 0 : index
    %c0_11 = arith.constant 0 : index
    %6 = vector.load %arg6[%c0_10, %c0_11] : memref<208x1xf32, #tpu.memory_space<vmem>>, vector<64x1xf32>
    %c64_12 = arith.constant 64 : index
    %c0_13 = arith.constant 0 : index
    %7 = vector.load %arg6[%c64_12, %c0_13] : memref<208x1xf32, #tpu.memory_space<vmem>>, vector<64x1xf32>
    %c128 = arith.constant 128 : index
    %c0_14 = arith.constant 0 : index
    %8 = vector.load %arg6[%c128, %c0_14] : memref<208x1xf32, #tpu.memory_space<vmem>>, vector<64x1xf32>
    %c192 = arith.constant 192 : index
    %c0_15 = arith.constant 0 : index
    %9 = vector.load %arg6[%c192, %c0_15] : memref<208x1xf32, #tpu.memory_space<vmem>>, vector<6x1xf32>
    %c200 = arith.constant 200 : index
    %c0_16 = arith.constant 0 : index
    %10 = vector.load %arg6[%c200, %c0_16] : memref<208x1xf32, #tpu.memory_space<vmem>>, vector<3x1xf32>
    %cst = arith.constant dense<0.000000e+00> : vector<64x256xf32>
    %11 = tpu.matmul %1, %0, %cst {dimension_numbers = #tpu.dot_dimension_numbers<[1], [0], [0], [1], [0, 0, 1, 1], [], []>} : vector<64x14xbf16>, vector<14x256xbf16>, vector<64x256xf32> -> vector<64x256xf32>
    %12 = vector.broadcast %6 : vector<64x1xf32> to vector<64x256xf32>
    %13 = arith.addf %11, %12 : vector<64x256xf32>
    %14 = arith.truncf %13 : vector<64x256xf32> to vector<64x256xbf16>
    %cst_17 = arith.constant 0.000000e+00 : bf16
    %15 = vector.broadcast %cst_17 : bf16 to vector<64x256xbf16>
    %16 = arith.maximumf %14, %15 : vector<64x256xbf16>
    %cst_18 = arith.constant dense<0.000000e+00> : vector<64x256xf32>
    %17 = tpu.matmul %2, %16, %cst_18 {dimension_numbers = #tpu.dot_dimension_numbers<[1], [0], [0], [1], [0, 0, 1, 1], [], []>} : vector<64x64xbf16>, vector<64x256xbf16>, vector<64x256xf32> -> vector<64x256xf32>
    %18 = vector.broadcast %7 : vector<64x1xf32> to vector<64x256xf32>
    %19 = arith.addf %17, %18 : vector<64x256xf32>
    %20 = arith.truncf %19 : vector<64x256xf32> to vector<64x256xbf16>
    %cst_19 = arith.constant 0.000000e+00 : bf16
    %21 = vector.broadcast %cst_19 : bf16 to vector<64x256xbf16>
    %22 = arith.maximumf %20, %21 : vector<64x256xbf16>
    %cst_20 = arith.constant dense<0.000000e+00> : vector<64x256xf32>
    %23 = tpu.matmul %3, %22, %cst_20 {dimension_numbers = #tpu.dot_dimension_numbers<[1], [0], [0], [1], [0, 0, 1, 1], [], []>} : vector<64x64xbf16>, vector<64x256xbf16>, vector<64x256xf32> -> vector<64x256xf32>
    %24 = vector.broadcast %8 : vector<64x1xf32> to vector<64x256xf32>
    %25 = arith.addf %23, %24 : vector<64x256xf32>
    %26 = arith.truncf %25 : vector<64x256xf32> to vector<64x256xbf16>
    %cst_21 = arith.constant 0.000000e+00 : bf16
    %27 = vector.broadcast %cst_21 : bf16 to vector<64x256xbf16>
    %28 = arith.maximumf %26, %27 : vector<64x256xbf16>
    %cst_22 = arith.constant dense<0.000000e+00> : vector<6x256xf32>
    %29 = tpu.matmul %4, %28, %cst_22 {dimension_numbers = #tpu.dot_dimension_numbers<[1], [0], [0], [1], [0, 0, 1, 1], [], []>} : vector<6x64xbf16>, vector<64x256xbf16>, vector<6x256xf32> -> vector<6x256xf32>
    %30 = vector.broadcast %9 : vector<6x1xf32> to vector<6x256xf32>
    %31 = arith.addf %29, %30 : vector<6x256xf32>
    %32 = arith.truncf %31 : vector<6x256xf32> to vector<6x256xbf16>
    %cst_23 = arith.constant 0.000000e+00 : bf16
    %33 = vector.broadcast %cst_23 : bf16 to vector<6x256xbf16>
    %34 = arith.maximumf %32, %33 : vector<6x256xbf16>
    %cst_24 = arith.constant dense<0.000000e+00> : vector<3x256xf32>
    %35 = tpu.matmul %5, %34, %cst_24 {dimension_numbers = #tpu.dot_dimension_numbers<[1], [0], [0], [1], [0, 0, 1, 1], [], []>} : vector<3x6xbf16>, vector<6x256xbf16>, vector<3x256xf32> -> vector<3x256xf32>
    %36 = vector.broadcast %10 : vector<3x1xf32> to vector<3x256xf32>
    %37 = arith.addf %35, %36 : vector<3x256xf32>
    %c0_25 = arith.constant 0 : index
    %c0_26 = arith.constant 0 : index
    %38 = vector.load %arg7[%c0_25, %c0_26] : memref<3x256xf32, #tpu.memory_space<vmem>>, vector<3x256xf32>
    tpu.vector_store %arg7[%c0_25, %c0_26], %37 {strides = array<i32>} : memref<3x256xf32, #tpu.memory_space<vmem>>, vector<3x256xf32>,
    return
  }
  func.func @transform_0(%arg0: i32) -> (i32, i32) {
    %c0_i32 = arith.constant 0 : i32
    %c0_i32_0 = arith.constant 0 : i32
    return %c0_i32, %arg0 : i32, i32
  }
  func.func @transform_1(%arg0: i32) -> (i32, i32) {
    %c0_i32 = arith.constant 0 : i32
    %c0_i32_0 = arith.constant 0 : i32
    %c0_i32_1 = arith.constant 0 : i32
    return %c0_i32, %c0_i32_0 : i32, i32
  }
  func.func @transform_2(%arg0: i32) -> (i32, i32) {
    %c0_i32 = arith.constant 0 : i32
    %c0_i32_0 = arith.constant 0 : i32
    %c0_i32_1 = arith.constant 0 : i32
    return %c0_i32, %c0_i32_0 : i32, i32
  }
  func.func @transform_3(%arg0: i32) -> (i32, i32) {
    %c0_i32 = arith.constant 0 : i32
    %c0_i32_0 = arith.constant 0 : i32
    %c0_i32_1 = arith.constant 0 : i32
    return %c0_i32, %c0_i32_0 : i32, i32
  }
  func.func @transform_4(%arg0: i32) -> (i32, i32) {
    %c0_i32 = arith.constant 0 : i32
    %c0_i32_0 = arith.constant 0 : i32
    %c0_i32_1 = arith.constant 0 : i32
    return %c0_i32, %c0_i32_0 : i32, i32
  }
  func.func @transform_5(%arg0: i32) -> (i32, i32) {
    %c0_i32 = arith.constant 0 : i32
    %c0_i32_0 = arith.constant 0 : i32
    %c0_i32_1 = arith.constant 0 : i32
    return %c0_i32, %c0_i32_0 : i32, i32
  }
  func.func @transform_6(%arg0: i32) -> (i32, i32) {
    %c0_i32 = arith.constant 0 : i32
    %c0_i32_0 = arith.constant 0 : i32
    return %c0_i32, %arg0 : i32, i32
  }
}

</mosaic_0001>

<llo_original>
// kernel: texture_decoder_forward.1
$region0: #{texture_decoder_forward.1}
  #allocation0 [shape = 'u32[]', space=smem, size = 0x4, offset = 0x4, fixed_abs, tag = 'smem constant byte address 0x4 - core index']
  #allocation1 [shape = 'u32[72,128]{1,0:T(1,128)}', space=vmem, size = 0x9000, scoped, tag = 'internal scratch']
  %s0 = inlined_call_operand.vmem [shape: bf16[14,384], index: 0, kind: input, shape index: {}]
  %s1 = inlined_call_operand.vmem [shape: bf16[64,14], index: 1, kind: input, shape index: {}]
  %s2 = inlined_call_operand.vmem [shape: bf16[128,64], index: 2, kind: input, shape index: {}]
  %s3 = inlined_call_operand.vmem [shape: bf16[6,64], index: 3, kind: input, shape index: {}]
  %s4 = inlined_call_operand.vmem [shape: bf16[3,6], index: 4, kind: input, shape index: {}]
  %s5 = inlined_call_operand.vmem [shape: f32[208,1], index: 5, kind: input, shape index: {}]
  %s6 = inlined_call_operand.vmem [shape: f32[3,384], index: 6, kind: output, shape index: {}]
  %s7 = sld [smem:[#allocation0]]
  $region185: #{texture_decoder_forward.1} parent=0
    _
  %s9 = ssub.s32 1, %s7
  %s10 = scalar_select 0, %s9, %s7
  $region1: #{texture_decoder_forward.1} parent=0
    #allocation2 [shape = 'u8[16384]{0}', space=vmem, size = 0x4000, scoped, tag = 'input window, operand 0']
    #allocation3 [shape = 'u8[8192]{0}', space=vmem, size = 0x2000, scoped, tag = 'output window, operand 0']
    loop: start=0, step=1, limit=4
    $region2: #{texture_decoder_forward.1} parent=1 // loop_pre_header
      _
    $region3: #{texture_decoder_forward.1} parent=1 // loop_header
      %s12 = sphi 0, %s16
      %p13 = scmp.ge.s32.totalorder %s12, 4
      %s22 = sphi 0, %s24
      %s25 = sphi 0, %s22
      %s26 = sphi 0, %s25
      %s42 = sphi 0, %s26
      %s46 = sphi 0, %s46
      %s48 = sphi 0, %s46
      %s49 = sphi 0, %s48
      %s63 = sphi 0, %s49
      %s67 = sphi 0, %s67
      %s69 = sphi 0, %s67
      %s70 = sphi 0, %s69
      %s84 = sphi 0, %s70
      %s88 = sphi 0, %s88
      %s90 = sphi 0, %s88
      %s91 = sphi 0, %s90
      %s105 = sphi 0, %s91
      %s109 = sphi 0, %s109
      %s111 = sphi 0, %s109
      %s112 = sphi 0, %s111
      %s126 = sphi 0, %s112
      %s130 = sphi 0, %s130
      %s132 = sphi 0, %s130
      %s133 = sphi 0, %s132
      %s147 = sphi 0, %s133
      %s153 = sphi 0, %s155
      %s156 = sphi 0, %s153
      %s157 = sphi 0, %s156
      %s173 = sphi 0, %s157
    $region4: #{texture_decoder_forward.1} parent=1 // loop_header_branch
      %15 = sbr.rel (%p13) target = $region8
    $region5: #{texture_decoder_forward.1} parent=1 // loop_body
      %s17 = ssub.s32 %s12, 1
      %s18 = ssub.s32 %s12, 2
      %s19 = sadd.s32 %s12, 1
      %s20 = ssub.s32 %s12, %s19
      %p21 = scmp.eq.s32.totalorder %s20, 0
      %s23 = sadd.s32 %s22, 1
      %s24 = scalar_select %p21, %s22, %s23
      %p27 = pneg %p21
      %p28 = scmp.eq.s32.totalorder %s12, 1
      %p29 = por %p27, %p28
      %p30 = scmp.ne.s32.totalorder %s22, %s25
      %p31 = scmp.eq.s32.totalorder %s12, 0
      %p32 = por %p30, %p31
      %p33 = scmp.ne.s32.totalorder %s22, %s25
      %p34 = scmp.eq.s32.totalorder %s17, 1
      %p35 = por %p33, %p34
      %p36 = scmp.ne.s32.totalorder %s25, %s26
      %p37 = scmp.eq.s32.totalorder %s17, 0
      %p38 = por %p36, %p37
      %p39 = scmp.ne.s32.totalorder %s25, %s26
      %p40 = scmp.eq.s32.totalorder %s18, 1
      %p41 = por %p39, %p40
      %p43 = scmp.ne.s32.totalorder %s26, %s42
      %p44 = scmp.eq.s32.totalorder %s18, 0
      %p45 = por %p43, %p44
      %s47 = sadd.s32 %s46, 1
      %p50 = scmp.eq.s32.totalorder %s12, 1
      %p51 = scmp.ne.s32.totalorder %s46, %s48
      %p52 = scmp.eq.s32.totalorder %s12, 0
      %p53 = por %p51, %p52
      %p54 = scmp.ne.s32.totalorder %s46, %s48
      %p55 = scmp.eq.s32.totalorder %s17, 1
      %p56 = por %p54, %p55
      %p57 = scmp.ne.s32.totalorder %s48, %s49
      %p58 = scmp.eq.s32.totalorder %s17, 0
      %p59 = por %p57, %p58
      %p60 = scmp.ne.s32.totalorder %s48, %s49
      %p61 = scmp.eq.s32.totalorder %s18, 1
      %p62 = por %p60, %p61
      %p64 = scmp.ne.s32.totalorder %s49, %s63
      %p65 = scmp.eq.s32.totalorder %s18, 0
      %p66 = por %p64, %p65
      %s68 = sadd.s32 %s67, 1
      %p71 = scmp.eq.s32.totalorder %s12, 1
      %p72 = scmp.ne.s32.totalorder %s67, %s69
      %p73 = scmp.eq.s32.totalorder %s12, 0
      %p74 = por %p72, %p73
      %p75 = scmp.ne.s32.totalorder %s67, %s69
      %p76 = scmp.eq.s32.totalorder %s17, 1
      %p77 = por %p75, %p76
      %p78 = scmp.ne.s32.totalorder %s69, %s70
      %p79 = scmp.eq.s32.totalorder %s17, 0
      %p80 = por %p78, %p79
      %p81 = scmp.ne.s32.totalorder %s69, %s70
      %p82 = scmp.eq.s32.totalorder %s18, 1
      %p83 = por %p81, %p82
      %p85 = scmp.ne.s32.totalorder %s70, %s84
      %p86 = scmp.eq.s32.totalorder %s18, 0
      %p87 = por %p85, %p86
      %s89 = sadd.s32 %s88, 1
      %p92 = scmp.eq.s32.totalorder %s12, 1
      %p93 = scmp.ne.s32.totalorder %s88, %s90
      %p94 = scmp.eq.s32.totalorder %s12, 0
      %p95 = por %p93, %p94
      %p96 = scmp.ne.s32.totalorder %s88, %s90
      %p97 = scmp.eq.s32.totalorder %s17, 1
      %p98 = por %p96, %p97
      %p99 = scmp.ne.s32.totalorder %s90, %s91
      %p100 = scmp.eq.s32.totalorder %s17, 0
      %p101 = por %p99, %p100
      %p102 = scmp.ne.s32.totalorder %s90, %s91
      %p103 = scmp.eq.s32.totalorder %s18, 1
      %p104 = por %p102, %p103
      %p106 = scmp.ne.s32.totalorder %s91, %s105
      %p107 = scmp.eq.s32.totalorder %s18, 0
      %p108 = por %p106, %p107
      %s110 = sadd.s32 %s109, 1
      %p113 = scmp.eq.s32.totalorder %s12, 1
      %p114 = scmp.ne.s32.totalorder %s109, %s111
      %p115 = scmp.eq.s32.totalorder %s12, 0
      %p116 = por %p114, %p115
      %p117 = scmp.ne.s32.totalorder %s109, %s111
      %p118 = scmp.eq.s32.totalorder %s17, 1
      %p119 = por %p117, %p118
      %p120 = scmp.ne.s32.totalorder %s111, %s112
      %p121 = scmp.eq.s32.totalorder %s17, 0
      %p122 = por %p120, %p121
      %p123 = scmp.ne.s32.totalorder %s111, %s112
      %p124 = scmp.eq.s32.totalorder %s18, 1
      %p125 = por %p123, %p124
      %p127 = scmp.ne.s32.totalorder %s112, %s126
      %p128 = scmp.eq.s32.totalorder %s18, 0
      %p129 = por %p127, %p128
      %s131 = sadd.s32 %s130, 1
      %p134 = scmp.eq.s32.totalorder %s12, 1
      %p135 = scmp.ne.s32.totalorder %s130, %s132
      %p136 = scmp.eq.s32.totalorder %s12, 0
      %p137 = por %p135, %p136
      %p138 = scmp.ne.s32.totalorder %s130, %s132
      %p139 = scmp.eq.s32.totalorder %s17, 1
      %p140 = por %p138, %p139
      %p141 = scmp.ne.s32.totalorder %s132, %s133
      %p142 = scmp.eq.s32.totalorder %s17, 0
      %p143 = por %p141, %p142
      %p144 = scmp.ne.s32.totalorder %s132, %s133
      %p145 = scmp.eq.s32.totalorder %s18, 1
      %p146 = por %p144, %p145
      %p148 = scmp.ne.s32.totalorder %s133, %s147
      %p149 = scmp.eq.s32.totalorder %s18, 0
      %p150 = por %p148, %p149
      %s151 = ssub.s32 %s12, %s19
      %p152 = scmp.eq.s32.totalorder %s151, 0
      %s154 = sadd.s32 %s153, 1
      %s155 = scalar_select %p152, %s153, %s154
      %p158 = pneg %p152
      %p159 = scmp.eq.s32.totalorder %s12, 1
      %p160 = por %p158, %p159
      %p161 = scmp.ne.s32.totalorder %s153, %s156
      %p162 = scmp.eq.s32.totalorder %s12, 0
      %p163 = por %p161, %p162
      %p164 = scmp.ne.s32.totalorder %s153, %s156
      %p165 = scmp.eq.s32.totalorder %s17, 1
      %p166 = por %p164, %p165
      %p167 = scmp.ne.s32.totalorder %s156, %s157
      %p168 = scmp.eq.s32.totalorder %s17, 0
      %p169 = por %p167, %p168
      %p170 = scmp.ne.s32.totalorder %s156, %s157
      %p171 = scmp.eq.s32.totalorder %s18, 1
      %p172 = por %p170, %p171
      %p174 = scmp.ne.s32.totalorder %s157, %s173
      %p175 = scmp.eq.s32.totalorder %s18, 0
      %p176 = por %p174, %p175
      %p177 = scmp.le.s32.totalorder 1, %s12
      %p178 = scmp.lt.s32.totalorder %s12, 3
      %p179 = pnand %p177, %p178
      %p180 = pneg %p179
      // Predicated region
      $region9: #{texture_decoder_forward.1} parent=5 // pred_check
        _
      $region10: #{texture_decoder_forward.1} parent=5 // pred_check_branch
        %182 = sbr.rel (%p179) target = $region12
      $region11: #{texture_decoder_forward.1} parent=5 // pred_region
        %s183 = ssub.s32 %s12, 1
        // Predicated region
        $region13: #{texture_decoder_forward.1} parent=11 // pred_check
          %p184 = pneg %p59
        $region14: #{texture_decoder_forward.1} parent=11 // pred_check_branch
          %186 = sbr.rel (%p184) target = $region16
        $region15: #{texture_decoder_forward.1} parent=11 // pred_region
          _
        $region16: #{texture_decoder_forward.1} parent=11 // pred_fallthru
          _
        // Predicated region
        $region17: #{texture_decoder_forward.1} parent=11 // pred_check
          %p187 = pneg %p80
        $region18: #{texture_decoder_forward.1} parent=11 // pred_check_branch
          %189 = sbr.rel (%p187) target = $region20
        $region19: #{texture_decoder_forward.1} parent=11 // pred_region
          _
        $region20: #{texture_decoder_forward.1} parent=11 // pred_fallthru
          _
        // Predicated region
        $region21: #{texture_decoder_forward.1} parent=11 // pred_check
          %p190 = pneg %p101
        $region22: #{texture_decoder_forward.1} parent=11 // pred_check_branch
          %192 = sbr.rel (%p190) target = $region24
        $region23: #{texture_decoder_forward.1} parent=11 // pred_region
          _
        $region24: #{texture_decoder_forward.1} parent=11 // pred_fallthru
          _
        // Predicated region
        $region25: #{texture_decoder_forward.1} parent=11 // pred_check
          %p193 = pneg %p122
        $region26: #{texture_decoder_forward.1} parent=11 // pred_check_branch
          %195 = sbr.rel (%p193) target = $region28
        $region27: #{texture_decoder_forward.1} parent=11 // pred_region
          _
        $region28: #{texture_decoder_forward.1} parent=11 // pred_fallthru
          _
        // Predicated region
        $region29: #{texture_decoder_forward.1} parent=11 // pred_check
          %p196 = pneg %p143
        $region30: #{texture_decoder_forward.1} parent=11 // pred_check_branch
          %198 = sbr.rel (%p196) target = $region32
        $region31: #{texture_decoder_forward.1} parent=11 // pred_region
          _
        $region32: #{texture_decoder_forward.1} parent=11 // pred_fallthru
          _
      $region12: #{texture_decoder_forward.1} parent=5 // pred_fallthru
        _
      %p199 = scmp.lt.s32.totalorder %s12, 2
      // Predicated region
      $region33: #{texture_decoder_forward.1} parent=5 // pred_check
        %p200 = pneg %p199
      $region34: #{texture_decoder_forward.1} parent=5 // pred_check_branch
        %202 = sbr.rel (%p200) target = $region36
      $region35: #{texture_decoder_forward.1} parent=5 // pred_region
        // Predicated region
        $region37: #{texture_decoder_forward.1} parent=35 // pred_check
          %p203 = pneg %p32
        $region38: #{texture_decoder_forward.1} parent=35 // pred_check_branch
          %205 = sbr.rel (%p203) target = $region40
        $region39: #{texture_decoder_forward.1} parent=35 // pred_region
          %s206 = sand.u32 %s22, 1
          %s207 = sand.u32 %s22, 1
          %s208 = smul.addr %s207, 16
          %s209 = scalar_lea.vmem [#allocation2], %s208
          %s210 = smul.u32 2, %s12
          %s211 = ssub.s32 3, %s210
          %p212 = scmp.lt.s32.totalorder %s211, 2
          %s213 = scalar_select %p212, %s211, 2
          %s214 = smul.u32 8, %s213
          %p215 = scmp.ne.s32.totalorder 0, %s214
          %s216 = smul.addr %s210, 4
          %s217 = scalar_lea.vmem %s0, %s216
          %s218 = smul.u32 %s213, 4
          // Predicated region
          $region41: #{texture_decoder_forward.1} parent=39 // pred_check
            %p219 = pneg %p215
          $region42: #{texture_decoder_forward.1} parent=39 // pred_check_branch
            %221 = sbr.rel (%p219) target = $region44
          $region43: #{texture_decoder_forward.1} parent=39 // pred_region
            %p222 = scmp.lt.u32.totalorder %s218, 8
            %p223 = pneg %p222
            // Predicated region
            $region45: #{texture_decoder_forward.1} parent=43 // pred_check
              _
            $region46: #{texture_decoder_forward.1} parent=43 // pred_check_branch
              %225 = sbr.rel (%p222) target = $region48
            $region47: #{texture_decoder_forward.1} parent=43 // pred_region
              %s243 = sand.u32 %s218, 7
              %p244 = scmp.eq.s32.totalorder %s243, 0
              // Predicated region
              $region60: #{texture_decoder_forward.1} parent=47 // pred_check
                %p245 = pneg %p244
              $region61: #{texture_decoder_forward.1} parent=47 // pred_check_branch
                %247 = sbr.rel (%p245) target = $region63
              $region62: #{texture_decoder_forward.1} parent=47 // pred_region
                %s248 = sshrl.u32 %s218, 3
                %s249 = sshrl.u32 %s248, 4
                // While loop
                $region64: #{texture_decoder_forward.1} parent=62 // loop_pre_header
                  _
                $region65: #{texture_decoder_forward.1} parent=62 // loop_header
                  %s251 = sphi 0, %s253
                  %p252 = scmp.ge.s32.totalorder %s251, %s249
                  %s256 = sphi 0, %s325
                  %s257 = sphi %s217, %s328
                  %s258 = sphi %s209, %s329
                $region66: #{texture_decoder_forward.1} parent=62 // loop_header_branch
                  %255 = sbr.rel (%p252) target = $region70
                $region67: #{texture_decoder_forward.1} parent=62 // loop_body
                  %v259 = vld [vmem:[%s257] sm:$0xff]
                  %260 = vst [vmem:[%s258] sm:$0xff] %v259
                  %v261 = vld [vmem:[%s257 + $0x8] sm:$0xff]
                  %262 = vst [vmem:[%s258 + $0x8] sm:$0xff] %v261
                  %v263 = vld [vmem:[%s257 + $0x10] sm:$0xff]
                  %264 = vst [vmem:[%s258 + $0x10] sm:$0xff] %v263
                  %v265 = vld [vmem:[%s257 + $0x18] sm:$0xff]
                  %266 = vst [vmem:[%s258 + $0x18] sm:$0xff] %v265
                  %v267 = vld [vmem:[%s257 + $0x20] sm:$0xff]
                  %268 = vst [vmem:[%s258 + $0x20] sm:$0xff] %v267
                  %v269 = vld [vmem:[%s257 + $0x28] sm:$0xff]
                  %270 = vst [vmem:[%s258 + $0x28] sm:$0xff] %v269
                  %v271 = vld [vmem:[%s257 + $0x30] sm:$0xff]
                  %272 = vst [vmem:[%s258 + $0x30] sm:$0xff] %v271
                  %v273 = vld [vmem:[%s257 + $0x38] sm:$0xff]
                  %274 = vst [vmem:[%s258 + $0x38] sm:$0xff] %v273
                  %v275 = vld [vmem:[%s257 + $0x40] sm:$0xff]
                  %276 = vst [vmem:[%s258 + $0x40] sm:$0xff] %v275
                  %v277 = vld [vmem:[%s257 + $0x48] sm:$0xff]
                  %278 = vst [vmem:[%s258 + $0x48] sm:$0xff] %v277
                  %v279 = vld [vmem:[%s257 + $0x50] sm:$0xff]
                  %280 = vst [vmem:[%s258 + $0x50] sm:$0xff] %v279
                  %v281 = vld [vmem:[%s257 + $0x58] sm:$0xff]
                  %282 = vst [vmem:[%s258 + $0x58] sm:$0xff] %v281
                  %v283 = vld [vmem:[%s257 + $0x60] sm:$0xff]
                  %284 = vst [vmem:[%s258 + $0x60] sm:$0xff] %v283
                  %v285 = vld [vmem:[%s257 + $0x68] sm:$0xff]
                  %286 = vst [vmem:[%s258 + $0x68] sm:$0xff] %v285
                  %v287 = vld [vmem:[%s257 + $0x70] sm:$0xff]
                  %288 = vst [vmem:[%s258 + $0x70] sm:$0xff] %v287
                  %v289 = vld [vmem:[%s257 + $0x78] sm:$0xff]
                  %290 = vst [vmem:[%s258 + $0x78] sm:$0xff] %v289
                  %v291 = vld [vmem:[%s257 + $0xc] sm:$0xff]
                  %292 = vst [vmem:[%s258 + $0x8] sm:$0xff] %v291
                  %v293 = vld [vmem:[%s257 + $0x14] sm:$0xff]
                  %294 = vst [vmem:[%s258 + $0x10] sm:$0xff] %v293
                  %v295 = vld [vmem:[%s257 + $0x1c] sm:$0xff]
                  %296 = vst [vmem:[%s258 + $0x18] sm:$0xff] %v295
                  %v297 = vld [vmem:[%s257 + $0x24] sm:$0xff]
                  %298 = vst [vmem:[%s258 + $0x20] sm:$0xff] %v297
                  %v299 = vld [vmem:[%s257 + $0x2c] sm:$0xff]
                  %300 = vst [vmem:[%s258 + $0x28] sm:$0xff] %v299
                  %v301 = vld [vmem:[%s257 + $0x34] sm:$0xff]
                  %302 = vst [vmem:[%s258 + $0x30] sm:$0xff] %v301
                  %v303 = vld [vmem:[%s257 + $0x3c] sm:$0xff]
                  %304 = vst [vmem:[%s258 + $0x38] sm:$0xff] %v303
                  %v305 = vld [vmem:[%s257 + $0x44] sm:$0xff]
                  %306 = vst [vmem:[%s258 + $0x40] sm:$0xff] %v305
                  %v307 = vld [vmem:[%s257 + $0x4c] sm:$0xff]
                  %308 = vst [vmem:[%s258 + $0x48] sm:$0xff] %v307
                  %v309 = vld [vmem:[%s257 + $0x54] sm:$0xff]
                  %310 = vst [vmem:[%s258 + $0x50] sm:$0xff] %v309
                  %v311 = vld [vmem:[%s257 + $0x5c] sm:$0xff]
                  %312 = vst [vmem:[%s258 + $0x58] sm:$0xff] %v311
                  %v313 = vld [vmem:[%s257 + $0x64] sm:$0xff]
                  %314 = vst [vmem:[%s258 + $0x60] sm:$0xff] %v313
                  %v315 = vld [vmem:[%s257 + $0x6c] sm:$0xff]
                  %316 = vst [vmem:[%s258 + $0x68] sm:$0xff] %v315
                  %v317 = vld [vmem:[%s257 + $0x74] sm:$0xff]
                  %318 = vst [vmem:[%s258 + $0x70] sm:$0xff] %v317
                  %v319 = vld [vmem:[%s257 + $0x7c] sm:$0xff]
                  %320 = vst [vmem:[%s258 + $0x78] sm:$0xff] %v319
                  %v321 = vld [vmem:[%s257 + $0x84] sm:$0xff]
                  %322 = vst [vmem:[%s258 + $0x80] sm:$0xff] %v321
                  %s323 = sadd.s32 1, %s256
                  %p324 = scmp.ge.s32.totalorder %s323, %s249
                  %s325 = scalar_select %p324, 0, %s323
                  %s326 = smul.u32 %s325, 128
                  %s327 = smul.u32 %s325, 128
                  %s328 = scalar_lea.vmem %s217, %s326
                  %s329 = scalar_lea.vmem %s209, %s327 [#allocation2]
                $region68: #{texture_decoder_forward.1} parent=62 // loop_footer
                  %s253 = sadd.s32 %s251, 1
                $region69: #{texture_decoder_forward.1} parent=62 // loop_footer_branch
                  %250 = sbr.rel target = $region65
                $region70: #{texture_decoder_forward.1} parent=62 // loop_exit
                  _
                %s330 = sshrl.u32 %s248, 4
                %s331 = sand.u32 %s248, 15
                %s332 = smul.u32 %s330, 16
                %s333 = smul.u32 8, %s332
                %s334 = scalar_lea.vmem %s217, %s333
                %s335 = smul.u32 8, %s332
                %s336 = scalar_lea.vmem %s209, %s335 [#allocation2]
                // While loop
                $region71: #{texture_decoder_forward.1} parent=62 // loop_pre_header
                  _
                $region72: #{texture_decoder_forward.1} parent=62 // loop_header
                  %s338 = sphi 0, %s340
                  %p339 = scmp.ge.s32.totalorder %s338, %s331
                  %s343 = sphi 0, %s352
                  %s344 = sphi %s334, %s355
                  %s345 = sphi %s336, %s356
                $region73: #{texture_decoder_forward.1} parent=62 // loop_header_branch
                  %342 = sbr.rel (%p339) target = $region77
                $region74: #{texture_decoder_forward.1} parent=62 // loop_body
                  %v346 = vld [vmem:[%s344] sm:$0xff]
                  %347 = vst [vmem:[%s345] sm:$0xff] %v346
                  %v348 = vld [vmem:[%s344 + $0xc] sm:$0xff]
                  %349 = vst [vmem:[%s345 + $0x8] sm:$0xff] %v348
                  %s350 = sadd.s32 1, %s343
                  %p351 = scmp.ge.s32.totalorder %s350, %s331
                  %s352 = scalar_select %p351, 0, %s350
                  %s353 = smul.u32 %s352, 8
                  %s354 = smul.u32 %s352, 8
                  %s355 = scalar_lea.vmem %s334, %s353
                  %s356 = scalar_lea.vmem %s336, %s354 [#allocation2]
                $region75: #{texture_decoder_forward.1} parent=62 // loop_footer
                  %s340 = sadd.s32 %s338, 1
                $region76: #{texture_decoder_forward.1} parent=62 // loop_footer_branch
                  %337 = sbr.rel target = $region72
                $region77: #{texture_decoder_forward.1} parent=62 // loop_exit
                  _
              $region63: #{texture_decoder_forward.1} parent=47 // pred_fallthru
                _
              %p357 = pneg %p244
              // Predicated region
              $region78: #{texture_decoder_forward.1} parent=47 // pred_check
                _
              $region79: #{texture_decoder_forward.1} parent=47 // pred_check_branch
                %359 = sbr.rel (%p244) target = $region81
              $region80: #{texture_decoder_forward.1} parent=47 // pred_region
                %s360 = sand.u32 %s218, 7
                %s361 = ssub.s32 %s218, %s360
                %s362 = scalar_lea.vmem %s217, %s361
                %s363 = ssub.s32 %s218, %s360
                %s364 = scalar_lea.vmem %s209, %s363 [#allocation2]
                %s365 = sshrl.u32 %s218, 3
                %s366 = sshrl.u32 %s365, 4
                // While loop
                $region82: #{texture_decoder_forward.1} parent=80 // loop_pre_header
                  _
                $region83: #{texture_decoder_forward.1} parent=80 // loop_header
                  %s368 = sphi 0, %s370
                  %p369 = scmp.ge.s32.totalorder %s368, %s366
                  %s373 = sphi 0, %s442
                  %s374 = sphi %s217, %s445
                  %s375 = sphi %s209, %s446
                $region84: #{texture_decoder_forward.1} parent=80 // loop_header_branch
                  %372 = sbr.rel (%p369) target = $region88
                $region85: #{texture_decoder_forward.1} parent=80 // loop_body
                  %v376 = vld [vmem:[%s374] sm:$0xff]
                  %377 = vst [vmem:[%s375] sm:$0xff] %v376
                  %v378 = vld [vmem:[%s374 + $0x8] sm:$0xff]
                  %379 = vst [vmem:[%s375 + $0x8] sm:$0xff] %v378
                  %v380 = vld [vmem:[%s374 + $0x10] sm:$0xff]
                  %381 = vst [vmem:[%s375 + $0x10] sm:$0xff] %v380
                  %v382 = vld [vmem:[%s374 + $0x18] sm:$0xff]
                  %383 = vst [vmem:[%s375 + $0x18] sm:$0xff] %v382
                  %v384 = vld [vmem:[%s374 + $0x20] sm:$0xff]
                  %385 = vst [vmem:[%s375 + $0x20] sm:$0xff] %v384
                  %v386 = vld [vmem:[%s374 + $0x28] sm:$0xff]
                  %387 = vst [vmem:[%s375 + $0x28] sm:$0xff] %v386
                  %v388 = vld [vmem:[%s374 + $0x30] sm:$0xff]
                  %389 = vst [vmem:[%s375 + $0x30] sm:$0xff] %v388
                  %v390 = vld [vmem:[%s374 + $0x38] sm:$0xff]
                  %391 = vst [vmem:[%s375 + $0x38] sm:$0xff] %v390
                  %v392 = vld [vmem:[%s374 + $0x40] sm:$0xff]
                  %393 = vst [vmem:[%s375 + $0x40] sm:$0xff] %v392
                  %v394 = vld [vmem:[%s374 + $0x48] sm:$0xff]
                  %395 = vst [vmem:[%s375 + $0x48] sm:$0xff] %v394
                  %v396 = vld [vmem:[%s374 + $0x50] sm:$0xff]
                  %397 = vst [vmem:[%s375 + $0x50] sm:$0xff] %v396
                  %v398 = vld [vmem:[%s374 + $0x58] sm:$0xff]
                  %399 = vst [vmem:[%s375 + $0x58] sm:$0xff] %v398
                  %v400 = vld [vmem:[%s374 + $0x60] sm:$0xff]
                  %401 = vst [vmem:[%s375 + $0x60] sm:$0xff] %v400
                  %v402 = vld [vmem:[%s374 + $0x68] sm:$0xff]
                  %403 = vst [vmem:[%s375 + $0x68] sm:$0xff] %v402
                  %v404 = vld [vmem:[%s374 + $0x70] sm:$0xff]
                  %405 = vst [vmem:[%s375 + $0x70] sm:$0xff] %v404
                  %v406 = vld [vmem:[%s374 + $0x78] sm:$0xff]
                  %407 = vst [vmem:[%s375 + $0x78] sm:$0xff] %v406
                  %v408 = vld [vmem:[%s374 + $0xc] sm:$0xff]
                  %409 = vst [vmem:[%s375 + $0x8] sm:$0xff] %v408
                  %v410 = vld [vmem:[%s374 + $0x14] sm:$0xff]
                  %411 = vst [vmem:[%s375 + $0x10] sm:$0xff] %v410
                  %v412 = vld [vmem:[%s374 + $0x1c] sm:$0xff]
                  %413 = vst [vmem:[%s375 + $0x18] sm:$0xff] %v412
                  %v414 = vld [vmem:[%s374 + $0x24] sm:$0xff]
                  %415 = vst [vmem:[%s375 + $0x20] sm:$0xff] %v414
                  %v416 = vld [vmem:[%s374 + $0x2c] sm:$0xff]
                  %417 = vst [vmem:[%s375 + $0x28] sm:$0xff] %v416
                  %v418 = vld [vmem:[%s374 + $0x34] sm:$0xff]
                  %419 = vst [vmem:[%s375 + $0x30] sm:$0xff] %v418
                  %v420 = vld [vmem:[%s374 + $0x3c] sm:$0xff]
                  %421 = vst [vmem:[%s375 + $0x38] sm:$0xff] %v420
                  %v422 = vld [vmem:[%s374 + $0x44] sm:$0xff]
                  %423 = vst [vmem:[%s375 + $0x40] sm:$0xff] %v422
                  %v424 = vld [vmem:[%s374 + $0x4c] sm:$0xff]
                  %425 = vst [vmem:[%s375 + $0x48] sm:$0xff] %v424
                  %v426 = vld [vmem:[%s374 + $0x54] sm:$0xff]
                  %427 = vst [vmem:[%s375 + $0x50] sm:$0xff] %v426
                  %v428 = vld [vmem:[%s374 + $0x5c] sm:$0xff]
                  %429 = vst [vmem:[%s375 + $0x58] sm:$0xff] %v428
                  %v430 = vld [vmem:[%s374 + $0x64] sm:$0xff]
                  %431 = vst [vmem:[%s375 + $0x60] sm:$0xff] %v430
                  %v432 = vld [vmem:[%s374 + $0x6c] sm:$0xff]
                  %433 = vst [vmem:[%s375 + $0x68] sm:$0xff] %v432
                  %v434 = vld [vmem:[%s374 + $0x74] sm:$0xff]
                  %435 = vst [vmem:[%s375 + $0x70] sm:$0xff] %v434
                  %v436 = vld [vmem:[%s374 + $0x7c] sm:$0xff]
                  %437 = vst [vmem:[%s375 + $0x78] sm:$0xff] %v436
                  %v438 = vld [vmem:[%s374 + $0x84] sm:$0xff]
                  %439 = vst [vmem:[%s375 + $0x80] sm:$0xff] %v438
                  %s440 = sadd.s32 1, %s373
                  %p441 = scmp.ge.s32.totalorder %s440, %s366
                  %s442 = scalar_select %p441, 0, %s440
                  %s443 = smul.u32 %s442, 128
                  %s444 = smul.u32 %s442, 128
                  %s445 = scalar_lea.vmem %s217, %s443
                  %s446 = scalar_lea.vmem %s209, %s444 [#allocation2]
                $region86: #{texture_decoder_forward.1} parent=80 // loop_footer
                  %s370 = sadd.s32 %s368, 1
                $region87: #{texture_decoder_forward.1} parent=80 // loop_footer_branch
                  %367 = sbr.rel target = $region83
                $region88: #{texture_decoder_forward.1} parent=80 // loop_exit
                  _
                %s447 = sshrl.u32 %s365, 4
                %s448 = sand.u32 %s365, 15
                %s449 = smul.u32 %s447, 16
                %s450 = smul.u32 8, %s449
                %s451 = scalar_lea.vmem %s217, %s450
                %s452 = smul.u32 8, %s449
                %s453 = scalar_lea.vmem %s209, %s452 [#allocation2]
                // While loop
                $region89: #{texture_decoder_forward.1} parent=80 // loop_pre_header
                  _
                $region90: #{texture_decoder_forward.1} parent=80 // loop_header
                  %s455 = sphi 0, %s457
                  %p456 = scmp.ge.s32.totalorder %s455, %s448
                  %s460 = sphi 0, %s469
                  %s461 = sphi %s451, %s472
                  %s462 = sphi %s453, %s473
                $region91: #{texture_decoder_forward.1} parent=80 // loop_header_branch
                  %459 = sbr.rel (%p456) target = $region95
                $region92: #{texture_decoder_forward.1} parent=80 // loop_body
                  %v463 = vld [vmem:[%s461] sm:$0xff]
                  %464 = vst [vmem:[%s462] sm:$0xff] %v463
                  %v465 = vld [vmem:[%s461 + $0xc] sm:$0xff]
                  %466 = vst [vmem:[%s462 + $0x8] sm:$0xff] %v465
                  %s467 = sadd.s32 1, %s460
                  %p468 = scmp.ge.s32.totalorder %s467, %s448
                  %s469 = scalar_select %p468, 0, %s467
                  %s470 = smul.u32 %s469, 8
                  %s471 = smul.u32 %s469, 8
                  %s472 = scalar_lea.vmem %s451, %s470
                  %s473 = scalar_lea.vmem %s453, %s471 [#allocation2]
                $region93: #{texture_decoder_forward.1} parent=80 // loop_footer
                  %s457 = sadd.s32 %s455, 1
                $region94: #{texture_decoder_forward.1} parent=80 // loop_footer_branch
                  %454 = sbr.rel target = $region90
                $region95: #{texture_decoder_forward.1} parent=80 // loop_exit
                  _
                %s474 = sshll.u32 1, %s360
                %s475 = ssub.s32 %s474, 1
                loop: start=0, step=1, limit=1
                $region96: #{texture_decoder_forward.1} parent=80 // loop_pre_header
                  _
                $region97: #{texture_decoder_forward.1} parent=80 // loop_header
                  %s477 = sphi 0, %s481
                  %p478 = scmp.ge.s32.totalorder %s477, 1
                  %s482 = sphi %s362, %s362
                  %s483 = sphi %s364, %s364
                $region98: #{texture_decoder_forward.1} parent=80 // loop_header_branch
                  %480 = sbr.rel (%p478) target = $region102
                $region99: #{texture_decoder_forward.1} parent=80 // loop_body
                  %v484 = vld [vmem:[%s482] sm:%s475]
                  %485 = vst [vmem:[%s483] sm:%s475] %v484
                  %v486 = vld [vmem:[%s482 + $0xc] sm:%s475]
                  %487 = vst [vmem:[%s483 + $0x8] sm:%s475] %v486
                $region100: #{texture_decoder_forward.1} parent=80 // loop_footer
                  %s481 = sadd.s32 1, %s477
                $region101: #{texture_decoder_forward.1} parent=80 // loop_footer_branch
                  %476 = sbr.rel target = $region97
                $region102: #{texture_decoder_forward.1} parent=80 // loop_exit
                  _
              $region81: #{texture_decoder_forward.1} parent=47 // pred_fallthru
                _
            $region48: #{texture_decoder_forward.1} parent=43 // pred_fallthru
              _
            // Predicated region
            $region49: #{texture_decoder_forward.1} parent=43 // pred_check
              %p226 = pneg %p222
            $region50: #{texture_decoder_forward.1} parent=43 // pred_check_branch
              %228 = sbr.rel (%p226) target = $region52
            $region51: #{texture_decoder_forward.1} parent=43 // pred_region
              %s229 = sshll.u32 1, %s218
              %s230 = ssub.s32 %s229, 1
              loop: start=0, step=1, limit=1
              $region53: #{texture_decoder_forward.1} parent=51 // loop_pre_header
                _
              $region54: #{texture_decoder_forward.1} parent=51 // loop_header
                %s232 = sphi 0, %s236
                %p233 = scmp.ge.s32.totalorder %s232, 1
                %s237 = sphi %s217, %s217
                %s238 = sphi %s209, %s209
              $region55: #{texture_decoder_forward.1} parent=51 // loop_header_branch
                %235 = sbr.rel (%p233) target = $region59
              $region56: #{texture_decoder_forward.1} parent=51 // loop_body
                %v239 = vld [vmem:[%s237] sm:%s230]
                %240 = vst [vmem:[%s238] sm:%s230] %v239
                %v241 = vld [vmem:[%s237 + $0xc] sm:%s230]
                %242 = vst [vmem:[%s238 + $0x8] sm:%s230] %v241
              $region57: #{texture_decoder_forward.1} parent=51 // loop_footer
                %s236 = sadd.s32 1, %s232
              $region58: #{texture_decoder_forward.1} parent=51 // loop_footer_branch
                %231 = sbr.rel target = $region54
              $region59: #{texture_decoder_forward.1} parent=51 // loop_exit
                _
            $region52: #{texture_decoder_forward.1} parent=43 // pred_fallthru
              _
          $region44: #{texture_decoder_forward.1} parent=39 // pred_fallthru
            _
          %488 = vnop
        $region40: #{texture_decoder_forward.1} parent=35 // pred_fallthru
          _
      $region36: #{texture_decoder_forward.1} parent=5 // pred_fallthru
        _
      %p489 = scmp.le.s32.totalorder 1, %s12
      %p490 = scmp.lt.s32.totalorder %s12, 3
      %p491 = pnand %p489, %p490
      %p492 = pneg %p491
      // Predicated region
      $region103: #{texture_decoder_forward.1} parent=5 // pred_check
        _
      $region104: #{texture_decoder_forward.1} parent=5 // pred_check_branch
        %494 = sbr.rel (%p491) target = $region106
      $region105: #{texture_decoder_forward.1} parent=5 // pred_region
        %s495 = ssub.s32 %s12, 1
        %s496 = sand.u32 %s25, 1
        %s497 = sand.u32 %s25, 1
        %s498 = smul.addr %s497, 16
        %s499 = scalar_lea.vmem [#allocation2], %s498
        // Predicated region
        $region107: #{texture_decoder_forward.1} parent=105 // pred_check
          %p500 = pneg %p38
        $region108: #{texture_decoder_forward.1} parent=105 // pred_check_branch
          %502 = sbr.rel (%p500) target = $region110
        $region109: #{texture_decoder_forward.1} parent=105 // pred_region
          _
        $region110: #{texture_decoder_forward.1} parent=105 // pred_fallthru
          _
        %s503 = sand.u32 %s25, 1
        %s504 = sand.u32 %s25, 1
        %s505 = smul.addr %s504, 16
        %s506 = scalar_lea.vmem [#allocation2], %s505
        %p507 = pneg %p38
        %p508 = pneg %p35
        %p509 = pneg %p59
        %p510 = pneg %p56
        %p511 = pneg %p80
        %p512 = pneg %p77
        %p513 = pneg %p101
        %p514 = pneg %p98
        %p515 = pneg %p122
        %p516 = pneg %p119
        %p517 = pneg %p143
        %p518 = pneg %p140
        %p519 = pneg %p169
        %p520 = pneg %p166
        %s521 = sand.u32 %s156, 1
        %s522 = sand.u32 %s156, 1
        %s523 = smul.addr %s522, 8
        %s524 = scalar_lea.vmem [#allocation3], %s523
        %s525 = smul.u32 2, %s17
        %s526 = ssub.s32 3, %s525
        %p527 = scmp.lt.s32.totalorder %s526, 2
        %s528 = scalar_select %p527, %s526, 2
        %s529 = smul.u32 8, %s528
        %s530 = smul.u32 2, %s17
        %s531 = ssub.s32 3, %s530
        %p532 = scmp.lt.s32.totalorder %s531, 2
        %s533 = scalar_select %p532, %s531, 2
        %s534 = smul.u32 4, %s533
        %v536 = vld [vmem:[%s499] sm:$0xff]
        %v537 = vld [vmem:[%s499 + $0x8] sm:$0x77]
        %v538 = vld [vmem:[%s1] sm:$0xf]
        %v539 = vld [vmem:[%s1 + $0x4] sm:$0xf]
        %v540 = vld [vmem:[%s1 + $0x8] sm:$0xf]
        %v541 = vld [vmem:[%s1 + $0xc] sm:$0xf]
        %v542 = vld [vmem:[%s1 + $0x10] sm:$0xf]
        %v543 = vld [vmem:[%s1 + $0x14] sm:$0xf]
        %v544 = vld [vmem:[%s1 + $0x18] sm:$0xf]
        %v545 = vld [vmem:[%s1 + $0x1c] sm:$0xf]
        %v546 = vld [vmem:[%s2] sm:$0xf]
        %v547 = vld [vmem:[%s2 + $0x4] sm:$0xf]
        %v548 = vld [vmem:[%s2 + $0x8] sm:$0xf]
        %v549 = vld [vmem:[%s2 + $0xc] sm:$0xf]
        %v550 = vld [vmem:[%s2 + $0x10] sm:$0xf]
        %v551 = vld [vmem:[%s2 + $0x14] sm:$0xf]
        %v552 = vld [vmem:[%s2 + $0x18] sm:$0xf]
        %v553 = vld [vmem:[%s2 + $0x1c] sm:$0xf]
        %v554 = vld [vmem:[%s2 + $0x20] sm:$0xf]
        %v555 = vld [vmem:[%s2 + $0x24] sm:$0xf]
        %v556 = vld [vmem:[%s2 + $0x28] sm:$0xf]
        %v557 = vld [vmem:[%s2 + $0x2c] sm:$0xf]
        %v558 = vld [vmem:[%s2 + $0x30] sm:$0xf]
        %v559 = vld [vmem:[%s2 + $0x34] sm:$0xf]
        %v560 = vld [vmem:[%s2 + $0x38] sm:$0xf]
        %v561 = vld [vmem:[%s2 + $0x3c] sm:$0xf]
        %v562 = vld [vmem:[%s3] sm:$0x7]
        %v563 = vld [vmem:[%s4] sm:$0x3]
        %v564 = vld [vmem:[%s5] sm:$0xff]
        %v565 = vld [vmem:[%s5 + $0x8] sm:$0xff]
        %v566 = vld [vmem:[%s5 + $0x10] sm:$0xff]
        %v567 = vld [vmem:[%s5 + $0x18] sm:$0xff]
        %v568 = vld [vmem:[%s5 + $0x20] sm:$0xff]
        %v569 = vld [vmem:[%s5 + $0x28] sm:$0xff]
        %v570 = vld [vmem:[%s5 + $0x30] sm:$0xff]
        %v571 = vld [vmem:[%s5 + $0x38] sm:$0xff]
        %v572 = vld [vmem:[%s5 + $0x40] sm:$0xff]
        %v573 = vld [vmem:[%s5 + $0x48] sm:$0xff]
        %v574 = vld [vmem:[%s5 + $0x50] sm:$0xff]
        %v575 = vld [vmem:[%s5 + $0x58] sm:$0xff]
        %v576 = vld [vmem:[%s5 + $0x60] sm:$0xff]
        %v577 = vld [vmem:[%s5 + $0x68] sm:$0xff]
        %v578 = vld [vmem:[%s5 + $0x70] sm:$0xff]
        %v579 = vld [vmem:[%s5 + $0x78] sm:$0xff]
        %v580 = vld [vmem:[%s5 + $0x80] sm:$0xff]
        %v581 = vld [vmem:[%s5 + $0x88] sm:$0xff]
        %v582 = vld [vmem:[%s5 + $0x90] sm:$0xff]
        %v583 = vld [vmem:[%s5 + $0x98] sm:$0xff]
        %v584 = vld [vmem:[%s5 + $0xa0] sm:$0xff]
        %v585 = vld [vmem:[%s5 + $0xa8] sm:$0xff]
        %v586 = vld [vmem:[%s5 + $0xb0] sm:$0xff]
        %v587 = vld [vmem:[%s5 + $0xb8] sm:$0xff]
        %v588 = vld [vmem:[%s5 + $0xc0] sm:$0x3f]
        %v589 = vld [vmem:[%s5 + $0xc8] sm:$0x7]
        %591 = vset.pattern.permute.xlu0 0
        %592 = vperm.xlu0 %591, %v564
        %v593 = vpop.permute.xlu0 %592
        %596 = vset.pattern.permute.xlu0 0
        %597 = vperm.xlu0 %596, %v565
        %v598 = vpop.permute.xlu0 %597
        %601 = vset.pattern.permute.xlu0 0
        %602 = vperm.xlu0 %601, %v566
        %v603 = vpop.permute.xlu0 %602
        %606 = vset.pattern.permute.xlu0 0
        %607 = vperm.xlu0 %606, %v567
        %v608 = vpop.permute.xlu0 %607
        %611 = vset.pattern.permute.xlu0 0
        %612 = vperm.xlu0 %611, %v568
        %v613 = vpop.permute.xlu0 %612
        %616 = vset.pattern.permute.xlu0 0
        %617 = vperm.xlu0 %616, %v569
        %v618 = vpop.permute.xlu0 %617
        %621 = vset.pattern.permute.xlu0 0
        %622 = vperm.xlu0 %621, %v570
        %v623 = vpop.permute.xlu0 %622
        %626 = vset.pattern.permute.xlu0 0
        %627 = vperm.xlu0 %626, %v571
        %v628 = vpop.permute.xlu0 %627
        %v638 = vunpack.c.l.b16 %v538
        %v639 = vunpack.c.l.b16 %v539
        %v640 = vunpack.c.l.b16 %v540
        %v641 = vunpack.c.l.b16 %v541
        %v642 = vunpack.c.l.b16 %v542
        %v643 = vunpack.c.l.b16 %v543
        %v644 = vunpack.c.l.b16 %v544
        %v645 = vunpack.c.l.b16 %v545
        %v646 = vpack.c.b16 %v639, %v638
        %v647 = vpack.c.b16 %v641, %v640
        %v648 = vpack.c.b16 %v643, %v642
        %v649 = vpack.c.b16 %v645, %v644
        %v652 = vunpack.c.l.b16 %v536
        %v653 = vunpack.c.h.b16 %v536
        %v654 = vunpack.c.l.b16 %v537
        %v655 = vunpack.c.h.b16 %v537
        %v656 = vpack.c.b16 %v654, %v652
        %v657 = vpack.c.b16 %v655, %v653
        %vm658 = vcmask 113664
        %v660 = vsel %vm658, %v646, 0
        %v663 = vsel %vm658, %v647, 0
        %v666 = vsel %vm658, %v648, 0
        %v669 = vsel %vm658, %v649, 0
        %vm671 = vcmask 1046528
        %v673 = vsel %vm671, %v656, 0
        %v676 = vsel %vm671, %v657, 0
        %678 = vmatpush.bf16.msra.mxu0 0
        %679 = vmatpush.bf16.msra.mxu0 0
        %680 = vmatpush.bf16.msra.mxu0 0
        %681 = vmatpush.bf16.msra.mxu0 0
        %682 = vmatpush.bf16.msra.mxu0 0
        %683 = vmatpush.bf16.msra.mxu0 0
        %684 = vmatpush.bf16.msra.mxu0 0
        %685 = vmatpush.bf16.msra.mxu0 %v673
        %686 = vmatmul.bf16.gmra.mxu0 %v660
        %v687 = vpop.f32.mrf.mxu0
        %v688 = vadd.f32 %v593, %v687
        %v689 = vpop.f32.mrf.mxu0
        %v690 = vadd.f32 %v598, %v689
        %691 = vmatmul.bf16.gmra.mxu0 %v663
        %v692 = vpop.f32.mrf.mxu0
        %v693 = vadd.f32 %v603, %v692
        %v694 = vpop.f32.mrf.mxu0
        %v695 = vadd.f32 %v608, %v694
        %696 = vmatmul.bf16.gmra.mxu0 %v666
        %v697 = vpop.f32.mrf.mxu0
        %v698 = vadd.f32 %v613, %v697
        %v699 = vpop.f32.mrf.mxu0
        %v700 = vadd.f32 %v618, %v699
        %701 = vmatmul.bf16.gmra.mxu0 %v669
        %v702 = vpop.f32.mrf.mxu0
        %v703 = vadd.f32 %v623, %v702
        %v704 = vpop.f32.mrf.mxu0
        %v705 = vadd.f32 %v628, %v704
        %706 = vdwg.mxu0
        %707 = vmatpush.bf16.msra.mxu0 0
        %708 = vmatpush.bf16.msra.mxu0 0
        %709 = vmatpush.bf16.msra.mxu0 0
        %710 = vmatpush.bf16.msra.mxu0 0
        %711 = vmatpush.bf16.msra.mxu0 0
        %712 = vmatpush.bf16.msra.mxu0 0
        %713 = vmatpush.bf16.msra.mxu0 0
        %714 = vmatpush.bf16.msra.mxu0 %v676
        %715 = vmatmul.bf16.gmra.mxu0 %v660
        %v716 = vpop.f32.mrf.mxu0
        %v717 = vadd.f32 %v593, %v716
        %v718 = vpop.f32.mrf.mxu0
        %v719 = vadd.f32 %v598, %v718
        %720 = vmatmul.bf16.gmra.mxu0 %v663
        %v721 = vpop.f32.mrf.mxu0
        %v722 = vadd.f32 %v603, %v721
        %v723 = vpop.f32.mrf.mxu0
        %v724 = vadd.f32 %v608, %v723
        %725 = vmatmul.bf16.gmra.mxu0 %v666
        %v726 = vpop.f32.mrf.mxu0
        %v727 = vadd.f32 %v613, %v726
        %v728 = vpop.f32.mrf.mxu0
        %v729 = vadd.f32 %v618, %v728
        %730 = vmatmul.bf16.gmra.mxu0 %v669
        %v731 = vpop.f32.mrf.mxu0
        %v732 = vadd.f32 %v623, %v731
        %v733 = vpop.f32.mrf.mxu0
        %v734 = vadd.f32 %v628, %v733
        %735 = vdwg.mxu0
        %v736 = vpack.c.bf16 %v717, %v688
        %v737 = vpack.c.bf16 %v719, %v690
        %v738 = vpack.c.bf16 %v722, %v693
        %v739 = vpack.c.bf16 %v724, %v695
        %v740 = vpack.c.bf16 %v727, %v698
        %v741 = vpack.c.bf16 %v729, %v700
        %v742 = vpack.c.bf16 %v732, %v703
        %v743 = vpack.c.bf16 %v734, %v705
        %v744 = vunpack.c.l.bf16 %v736
        %v745 = vunpack.c.h.bf16 %v736
        %v746 = vunpack.c.l.bf16 %v737
        %v747 = vunpack.c.h.bf16 %v737
        %v748 = vunpack.c.l.bf16 %v738
        %v749 = vunpack.c.h.bf16 %v738
        %v750 = vunpack.c.l.bf16 %v739
        %v751 = vunpack.c.h.bf16 %v739
        %v752 = vunpack.c.l.bf16 %v740
        %v753 = vunpack.c.h.bf16 %v740
        %v754 = vunpack.c.l.bf16 %v741
        %v755 = vunpack.c.h.bf16 %v741
        %v756 = vunpack.c.l.bf16 %v742
        %v757 = vunpack.c.h.bf16 %v742
        %v758 = vunpack.c.l.bf16 %v743
        %v759 = vunpack.c.h.bf16 %v743
        %v760 = vmax.f32 %v744, 0.0
        %v761 = vmax.f32 %v745, 0.0
        %v762 = vmax.f32 %v746, 0.0
        %v763 = vmax.f32 %v747, 0.0
        %v764 = vmax.f32 %v748, 0.0
        %v765 = vmax.f32 %v749, 0.0
        %v766 = vmax.f32 %v750, 0.0
        %v767 = vmax.f32 %v751, 0.0
        %v768 = vmax.f32 %v752, 0.0
        %v769 = vmax.f32 %v753, 0.0
        %v770 = vmax.f32 %v754, 0.0
        %v771 = vmax.f32 %v755, 0.0
        %v772 = vmax.f32 %v756, 0.0
        %v773 = vmax.f32 %v757, 0.0
        %v774 = vmax.f32 %v758, 0.0
        %v775 = vmax.f32 %v759, 0.0
        %v776 = vpack.c.bf16 %v762, %v760
        %v777 = vpack.c.bf16 %v763, %v761
        %v778 = vpack.c.bf16 %v766, %v764
        %v779 = vpack.c.bf16 %v767, %v765
        %v780 = vpack.c.bf16 %v770, %v768
        %v781 = vpack.c.bf16 %v771, %v769
        %v782 = vpack.c.bf16 %v774, %v772
        %v783 = vpack.c.bf16 %v775, %v773
        %785 = vset.pattern.permute.xlu0 0
        %786 = vperm.xlu0 %785, %v572
        %v787 = vpop.permute.xlu0 %786
        %790 = vset.pattern.permute.xlu0 0
        %791 = vperm.xlu0 %790, %v573
        %v792 = vpop.permute.xlu0 %791
        %795 = vset.pattern.permute.xlu0 0
        %796 = vperm.xlu0 %795, %v574
        %v797 = vpop.permute.xlu0 %796
        %800 = vset.pattern.permute.xlu0 0
        %801 = vperm.xlu0 %800, %v575
        %v802 = vpop.permute.xlu0 %801
        %805 = vset.pattern.permute.xlu0 0
        %806 = vperm.xlu0 %805, %v576
        %v807 = vpop.permute.xlu0 %806
        %810 = vset.pattern.permute.xlu0 0
        %811 = vperm.xlu0 %810, %v577
        %v812 = vpop.permute.xlu0 %811
        %815 = vset.pattern.permute.xlu0 0
        %816 = vperm.xlu0 %815, %v578
        %v817 = vpop.permute.xlu0 %816
        %820 = vset.pattern.permute.xlu0 0
        %821 = vperm.xlu0 %820, %v579
        %v822 = vpop.permute.xlu0 %821
        %v832 = vunpack.c.l.b16 %v546
        %v833 = vunpack.c.l.b16 %v547
        %v834 = vunpack.c.l.b16 %v548
        %v835 = vunpack.c.l.b16 %v549
        %v836 = vunpack.c.l.b16 %v550
        %v837 = vunpack.c.l.b16 %v551
        %v838 = vunpack.c.l.b16 %v552
        %v839 = vunpack.c.l.b16 %v553
        %v840 = vpack.c.b16 %v833, %v832
        %v841 = vpack.c.b16 %v835, %v834
        %v842 = vpack.c.b16 %v837, %v836
        %v843 = vpack.c.b16 %v839, %v838
        %vm844 = vcmask 523264
        %v846 = vsel %vm844, %v840, 0
        %v849 = vsel %vm844, %v841, 0
        %v852 = vsel %vm844, %v842, 0
        %v855 = vsel %vm844, %v843, 0
        %857 = vmatpush.bf16.msra.mxu0 0
        %858 = vmatpush.bf16.msra.mxu0 0
        %859 = vmatpush.bf16.msra.mxu0 0
        %860 = vmatpush.bf16.msra.mxu0 0
        %861 = vmatpush.bf16.msra.mxu0 %v782
        %862 = vmatpush.bf16.msra.mxu0 %v780
        %863 = vmatpush.bf16.msra.mxu0 %v778
        %864 = vmatpush.bf16.msra.mxu0 %v776
        %865 = vmatmul.bf16.gmra.mxu0 %v846
        %v866 = vpop.f32.mrf.mxu0
        %v867 = vadd.f32 %v787, %v866
        %v868 = vpop.f32.mrf.mxu0
        %v869 = vadd.f32 %v792, %v868
        %870 = vmatmul.bf16.gmra.mxu0 %v849
        %v871 = vpop.f32.mrf.mxu0
        %v872 = vadd.f32 %v797, %v871
        %v873 = vpop.f32.mrf.mxu0
        %v874 = vadd.f32 %v802, %v873
        %875 = vmatmul.bf16.gmra.mxu0 %v852
        %v876 = vpop.f32.mrf.mxu0
        %v877 = vadd.f32 %v807, %v876
        %v878 = vpop.f32.mrf.mxu0
        %v879 = vadd.f32 %v812, %v878
        %880 = vmatmul.bf16.gmra.mxu0 %v855
        %v881 = vpop.f32.mrf.mxu0
        %v882 = vadd.f32 %v817, %v881
        %v883 = vpop.f32.mrf.mxu0
        %v884 = vadd.f32 %v822, %v883
        %885 = vdwg.mxu0
        %886 = vmatpush.bf16.msra.mxu0 0
        %887 = vmatpush.bf16.msra.mxu0 0
        %888 = vmatpush.bf16.msra.mxu0 0
        %889 = vmatpush.bf16.msra.mxu0 0
        %890 = vmatpush.bf16.msra.mxu0 %v783
        %891 = vmatpush.bf16.msra.mxu0 %v781
        %892 = vmatpush.bf16.msra.mxu0 %v779
        %893 = vmatpush.bf16.msra.mxu0 %v777
        %894 = vmatmul.bf16.gmra.mxu0 %v846
        %v895 = vpop.f32.mrf.mxu0
        %v896 = vadd.f32 %v787, %v895
        %v897 = vpop.f32.mrf.mxu0
        %v898 = vadd.f32 %v792, %v897
        %899 = vmatmul.bf16.gmra.mxu0 %v849
        %v900 = vpop.f32.mrf.mxu0
        %v901 = vadd.f32 %v797, %v900
        %v902 = vpop.f32.mrf.mxu0
        %v903 = vadd.f32 %v802, %v902
        %904 = vmatmul.bf16.gmra.mxu0 %v852
        %v905 = vpop.f32.mrf.mxu0
        %v906 = vadd.f32 %v807, %v905
        %v907 = vpop.f32.mrf.mxu0
        %v908 = vadd.f32 %v812, %v907
        %909 = vmatmul.bf16.gmra.mxu0 %v855
        %v910 = vpop.f32.mrf.mxu0
        %v911 = vadd.f32 %v817, %v910
        %v912 = vpop.f32.mrf.mxu0
        %v913 = vadd.f32 %v822, %v912
        %914 = vdwg.mxu0
        %v915 = vpack.c.bf16 %v896, %v867
        %v916 = vpack.c.bf16 %v898, %v869
        %v917 = vpack.c.bf16 %v901, %v872
        %v918 = vpack.c.bf16 %v903, %v874
        %v919 = vpack.c.bf16 %v906, %v877
        %v920 = vpack.c.bf16 %v908, %v879
        %v921 = vpack.c.bf16 %v911, %v882
        %v922 = vpack.c.bf16 %v913, %v884
        %v923 = vunpack.c.l.bf16 %v915
        %v924 = vunpack.c.h.bf16 %v915
        %v925 = vunpack.c.l.bf16 %v916
        %v926 = vunpack.c.h.bf16 %v916
        %v927 = vunpack.c.l.bf16 %v917
        %v928 = vunpack.c.h.bf16 %v917
        %v929 = vunpack.c.l.bf16 %v918
        %v930 = vunpack.c.h.bf16 %v918
        %v931 = vunpack.c.l.bf16 %v919
        %v932 = vunpack.c.h.bf16 %v919
        %v933 = vunpack.c.l.bf16 %v920
        %v934 = vunpack.c.h.bf16 %v920
        %v935 = vunpack.c.l.bf16 %v921
        %v936 = vunpack.c.h.bf16 %v921
        %v937 = vunpack.c.l.bf16 %v922
        %v938 = vunpack.c.h.bf16 %v922
        %v939 = vmax.f32 %v923, 0.0
        %v940 = vmax.f32 %v924, 0.0
        %v941 = vmax.f32 %v925, 0.0
        %v942 = vmax.f32 %v926, 0.0
        %v943 = vmax.f32 %v927, 0.0
        %v944 = vmax.f32 %v928, 0.0
        %v945 = vmax.f32 %v929, 0.0
        %v946 = vmax.f32 %v930, 0.0
        %v947 = vmax.f32 %v931, 0.0
        %v948 = vmax.f32 %v932, 0.0
        %v949 = vmax.f32 %v933, 0.0
        %v950 = vmax.f32 %v934, 0.0
        %v951 = vmax.f32 %v935, 0.0
        %v952 = vmax.f32 %v936, 0.0
        %v953 = vmax.f32 %v937, 0.0
        %v954 = vmax.f32 %v938, 0.0
        %v955 = vpack.c.bf16 %v941, %v939
        %v956 = vpack.c.bf16 %v942, %v940
        %v957 = vpack.c.bf16 %v945, %v943
        %v958 = vpack.c.bf16 %v946, %v944
        %v959 = vpack.c.bf16 %v949, %v947
        %v960 = vpack.c.bf16 %v950, %v948
        %v961 = vpack.c.bf16 %v953, %v951
        %v962 = vpack.c.bf16 %v954, %v952
        %964 = vset.pattern.permute.xlu0 0
        %965 = vperm.xlu0 %964, %v580
        %v966 = vpop.permute.xlu0 %965
        %969 = vset.pattern.permute.xlu0 0
        %970 = vperm.xlu0 %969, %v581
        %v971 = vpop.permute.xlu0 %970
        %974 = vset.pattern.permute.xlu0 0
        %975 = vperm.xlu0 %974, %v582
        %v976 = vpop.permute.xlu0 %975
        %979 = vset.pattern.permute.xlu0 0
        %980 = vperm.xlu0 %979, %v583
        %v981 = vpop.permute.xlu0 %980
        %984 = vset.pattern.permute.xlu0 0
        %985 = vperm.xlu0 %984, %v584
        %v986 = vpop.permute.xlu0 %985
        %989 = vset.pattern.permute.xlu0 0
        %990 = vperm.xlu0 %989, %v585
        %v991 = vpop.permute.xlu0 %990
        %994 = vset.pattern.permute.xlu0 0
        %995 = vperm.xlu0 %994, %v586
        %v996 = vpop.permute.xlu0 %995
        %999 = vset.pattern.permute.xlu0 0
        %1000 = vperm.xlu0 %999, %v587
        %v1001 = vpop.permute.xlu0 %1000
        %v1011 = vunpack.c.l.b16 %v554
        %v1012 = vunpack.c.l.b16 %v555
        %v1013 = vunpack.c.l.b16 %v556
        %v1014 = vunpack.c.l.b16 %v557
        %v1015 = vunpack.c.l.b16 %v558
        %v1016 = vunpack.c.l.b16 %v559
        %v1017 = vunpack.c.l.b16 %v560
        %v1018 = vunpack.c.l.b16 %v561
        %v1019 = vpack.c.b16 %v1012, %v1011
        %v1020 = vpack.c.b16 %v1014, %v1013
        %v1021 = vpack.c.b16 %v1016, %v1015
        %v1022 = vpack.c.b16 %v1018, %v1017
        %v1024 = vsel %vm844, %v1019, 0
        %v1027 = vsel %vm844, %v1020, 0
        %v1030 = vsel %vm844, %v1021, 0
        %v1033 = vsel %vm844, %v1022, 0
        %1035 = vmatpush.bf16.msra.mxu0 0
        %1036 = vmatpush.bf16.msra.mxu0 0
        %1037 = vmatpush.bf16.msra.mxu0 0
        %1038 = vmatpush.bf16.msra.mxu0 0
        %1039 = vmatpush.bf16.msra.mxu0 %v961
        %1040 = vmatpush.bf16.msra.mxu0 %v959
        %1041 = vmatpush.bf16.msra.mxu0 %v957
        %1042 = vmatpush.bf16.msra.mxu0 %v955
        %1043 = vmatmul.bf16.gmra.mxu0 %v1024
        %v1044 = vpop.f32.mrf.mxu0
        %v1045 = vadd.f32 %v966, %v1044
        %v1046 = vpop.f32.mrf.mxu0
        %v1047 = vadd.f32 %v971, %v1046
        %1048 = vmatmul.bf16.gmra.mxu0 %v1027
        %v1049 = vpop.f32.mrf.mxu0
        %v1050 = vadd.f32 %v976, %v1049
        %v1051 = vpop.f32.mrf.mxu0
        %v1052 = vadd.f32 %v981, %v1051
        %1053 = vmatmul.bf16.gmra.mxu0 %v1030
        %v1054 = vpop.f32.mrf.mxu0
        %v1055 = vadd.f32 %v986, %v1054
        %v1056 = vpop.f32.mrf.mxu0
        %v1057 = vadd.f32 %v991, %v1056
        %1058 = vmatmul.bf16.gmra.mxu0 %v1033
        %v1059 = vpop.f32.mrf.mxu0
        %v1060 = vadd.f32 %v996, %v1059
        %v1061 = vpop.f32.mrf.mxu0
        %v1062 = vadd.f32 %v1001, %v1061
        %1063 = vdwg.mxu0
        %1064 = vmatpush.bf16.msra.mxu0 0
        %1065 = vmatpush.bf16.msra.mxu0 0
        %1066 = vmatpush.bf16.msra.mxu0 0
        %1067 = vmatpush.bf16.msra.mxu0 0
        %1068 = vmatpush.bf16.msra.mxu0 %v962
        %1069 = vmatpush.bf16.msra.mxu0 %v960
        %1070 = vmatpush.bf16.msra.mxu0 %v958
        %1071 = vmatpush.bf16.msra.mxu0 %v956
        %1072 = vmatmul.bf16.gmra.mxu0 %v1024
        %v1073 = vpop.f32.mrf.mxu0
        %v1074 = vadd.f32 %v966, %v1073
        %v1075 = vpop.f32.mrf.mxu0
        %v1076 = vadd.f32 %v971, %v1075
        %1077 = vmatmul.bf16.gmra.mxu0 %v1027
        %v1078 = vpop.f32.mrf.mxu0
        %v1079 = vadd.f32 %v976, %v1078
        %v1080 = vpop.f32.mrf.mxu0
        %v1081 = vadd.f32 %v981, %v1080
        %1082 = vmatmul.bf16.gmra.mxu0 %v1030
        %v1083 = vpop.f32.mrf.mxu0
        %v1084 = vadd.f32 %v986, %v1083
        %v1085 = vpop.f32.mrf.mxu0
        %v1086 = vadd.f32 %v991, %v1085
        %1087 = vmatmul.bf16.gmra.mxu0 %v1033
        %v1088 = vpop.f32.mrf.mxu0
        %v1089 = vadd.f32 %v996, %v1088
        %v1090 = vpop.f32.mrf.mxu0
        %v1091 = vadd.f32 %v1001, %v1090
        %1092 = vdwg.mxu0
        %v1093 = vpack.c.bf16 %v1074, %v1045
        %v1094 = vpack.c.bf16 %v1076, %v1047
        %v1095 = vpack.c.bf16 %v1079, %v1050
        %v1096 = vpack.c.bf16 %v1081, %v1052
        %v1097 = vpack.c.bf16 %v1084, %v1055
        %v1098 = vpack.c.bf16 %v1086, %v1057
        %v1099 = vpack.c.bf16 %v1089, %v1060
        %v1100 = vpack.c.bf16 %v1091, %v1062
        %v1101 = vunpack.c.l.bf16 %v1093
        %v1102 = vunpack.c.h.bf16 %v1093
        %v1103 = vunpack.c.l.bf16 %v1094
        %v1104 = vunpack.c.h.bf16 %v1094
        %v1105 = vunpack.c.l.bf16 %v1095
        %v1106 = vunpack.c.h.bf16 %v1095
        %v1107 = vunpack.c.l.bf16 %v1096
        %v1108 = vunpack.c.h.bf16 %v1096
        %v1109 = vunpack.c.l.bf16 %v1097
        %v1110 = vunpack.c.h.bf16 %v1097
        %v1111 = vunpack.c.l.bf16 %v1098
        %v1112 = vunpack.c.h.bf16 %v1098
        %v1113 = vunpack.c.l.bf16 %v1099
        %v1114 = vunpack.c.h.bf16 %v1099
        %v1115 = vunpack.c.l.bf16 %v1100
        %v1116 = vunpack.c.h.bf16 %v1100
        %v1117 = vmax.f32 %v1101, 0.0
        %v1118 = vmax.f32 %v1102, 0.0
        %v1119 = vmax.f32 %v1103, 0.0
        %v1120 = vmax.f32 %v1104, 0.0
        %v1121 = vmax.f32 %v1105, 0.0
        %v1122 = vmax.f32 %v1106, 0.0
        %v1123 = vmax.f32 %v1107, 0.0
        %v1124 = vmax.f32 %v1108, 0.0
        %v1125 = vmax.f32 %v1109, 0.0
        %v1126 = vmax.f32 %v1110, 0.0
        %v1127 = vmax.f32 %v1111, 0.0
        %v1128 = vmax.f32 %v1112, 0.0
        %v1129 = vmax.f32 %v1113, 0.0
        %v1130 = vmax.f32 %v1114, 0.0
        %v1131 = vmax.f32 %v1115, 0.0
        %v1132 = vmax.f32 %v1116, 0.0
        %v1133 = vpack.c.bf16 %v1119, %v1117
        %v1134 = vpack.c.bf16 %v1120, %v1118
        %v1135 = vpack.c.bf16 %v1123, %v1121
        %v1136 = vpack.c.bf16 %v1124, %v1122
        %v1137 = vpack.c.bf16 %v1127, %v1125
        %v1138 = vpack.c.bf16 %v1128, %v1126
        %v1139 = vpack.c.bf16 %v1131, %v1129
        %v1140 = vpack.c.bf16 %v1132, %v1130
        %1142 = vset.pattern.permute.xlu0 0
        %1143 = vperm.xlu0 %1142, %v588
        %v1144 = vpop.permute.xlu0 %1143
        %v1147 = vsel %vm844, %v562, 0
        %1149 = vmatpush.bf16.msra.mxu0 0
        %1150 = vmatpush.bf16.msra.mxu0 0
        %1151 = vmatpush.bf16.msra.mxu0 0
        %1152 = vmatpush.bf16.msra.mxu0 0
        %1153 = vmatpush.bf16.msra.mxu0 %v1139
        %1154 = vmatpush.bf16.msra.mxu0 %v1137
        %1155 = vmatpush.bf16.msra.mxu0 %v1135
        %1156 = vmatpush.bf16.msra.mxu0 %v1133
        %1157 = vmatmul.bf16.gmra.mxu0 %v1147
        %v1158 = vpop.f32.mrf.mxu0
        %v1159 = vadd.f32 %v1144, %v1158
        %v1160 = vpop.f32.mrf.mxu0
        %1161 = vdwg.mxu0
        %1162 = vmatpush.bf16.msra.mxu0 0
        %1163 = vmatpush.bf16.msra.mxu0 0
        %1164 = vmatpush.bf16.msra.mxu0 0
        %1165 = vmatpush.bf16.msra.mxu0 0
        %1166 = vmatpush.bf16.msra.mxu0 %v1140
        %1167 = vmatpush.bf16.msra.mxu0 %v1138
        %1168 = vmatpush.bf16.msra.mxu0 %v1136
        %1169 = vmatpush.bf16.msra.mxu0 %v1134
        %1170 = vmatmul.bf16.gmra.mxu0 %v1147
        %v1171 = vpop.f32.mrf.mxu0
        %v1172 = vadd.f32 %v1144, %v1171
        %v1173 = vpop.f32.mrf.mxu0
        %1174 = vdwg.mxu0
        %v1175 = vpack.c.bf16 %v1172, %v1159
        %v1176 = vunpack.c.l.bf16 %v1175
        %v1177 = vunpack.c.h.bf16 %v1175
        %v1178 = vmax.f32 %v1176, 0.0
        %v1179 = vmax.f32 %v1177, 0.0
        %v1180 = vpack.c.bf16 %v1178, %v1178
        %v1181 = vpack.c.bf16 %v1179, %v1179
        %1183 = vset.pattern.permute.xlu0 0
        %1184 = vperm.xlu0 %1183, %v589
        %v1185 = vpop.permute.xlu0 %1184
        %vm1187 = vcmask 48128
        %v1189 = vsel %vm1187, %v563, 0
        %vm1191 = vcmask 1042432
        %v1193 = vsel %vm1191, %v1180, 0
        %v1196 = vsel %vm1191, %v1181, 0
        %1198 = vmatpush.bf16.msra.mxu0 0
        %1199 = vmatpush.bf16.msra.mxu0 0
        %1200 = vmatpush.bf16.msra.mxu0 0
        %1201 = vmatpush.bf16.msra.mxu0 0
        %1202 = vmatpush.bf16.msra.mxu0 0
        %1203 = vmatpush.bf16.msra.mxu0 0
        %1204 = vmatpush.bf16.msra.mxu0 0
        %1205 = vmatpush.bf16.msra.mxu0 %v1193
        %1206 = vmatmul.bf16.gmra.mxu0 %v1189
        %v1207 = vpop.f32.mrf.mxu0
        %v1208 = vadd.f32 %v1185, %v1207
        %v1209 = vpop.f32.mrf.mxu0
        %1210 = vdwg.mxu0
        %1211 = vmatpush.bf16.msra.mxu0 0
        %1212 = vmatpush.bf16.msra.mxu0 0
        %1213 = vmatpush.bf16.msra.mxu0 0
        %1214 = vmatpush.bf16.msra.mxu0 0
        %1215 = vmatpush.bf16.msra.mxu0 0
        %1216 = vmatpush.bf16.msra.mxu0 0
        %1217 = vmatpush.bf16.msra.mxu0 0
        %1218 = vmatpush.bf16.msra.mxu0 %v1196
        %1219 = vmatmul.bf16.gmra.mxu0 %v1189
        %v1220 = vpop.f32.mrf.mxu0
        %v1221 = vadd.f32 %v1185, %v1220
        %v1222 = vpop.f32.mrf.mxu0
        %1223 = vdwg.mxu0
        %v1226 = vrot.slane %v1221, 4
        %vm1227 = vcmask 1043456
        %v1228 = vsel %vm1227, %v1208, %v1226
        %1230 = vst [vmem:[%s524] sm:$0x77] %v1228
        %s1231 = sand.u32 %s156, 1
        %s1232 = sand.u32 %s156, 1
        %s1233 = smul.addr %s1232, 8
        %s1234 = scalar_lea.vmem [#allocation3], %s1233
        // Predicated region
        $region111: #{texture_decoder_forward.1} parent=105 // pred_check
          %p1235 = pneg %p166
        $region112: #{texture_decoder_forward.1} parent=105 // pred_check_branch
          %1237 = sbr.rel (%p1235) target = $region114
        $region113: #{texture_decoder_forward.1} parent=105 // pred_region
          %s1238 = smul.u32 2, %s17
          %s1239 = ssub.s32 3, %s1238
          %p1240 = scmp.lt.s32.totalorder %s1239, 2
          %s1241 = scalar_select %p1240, %s1239, 2
          %s1242 = smul.u32 4, %s1241
          %p1243 = scmp.ne.s32.totalorder 0, %s1242
          %s1244 = smul.addr %s1238, 4
          %s1245 = scalar_lea.vmem %s6, %s1244
          %s1246 = smul.u32 %s1241, 4
          // Predicated region
          $region115: #{texture_decoder_forward.1} parent=113 // pred_check
            %p1247 = pneg %p1243
          $region116: #{texture_decoder_forward.1} parent=113 // pred_check_branch
            %1249 = sbr.rel (%p1247) target = $region118
          $region117: #{texture_decoder_forward.1} parent=113 // pred_region
            %p1250 = scmp.lt.u32.totalorder %s1246, 8
            %p1251 = pneg %p1250
            // Predicated region
            $region119: #{texture_decoder_forward.1} parent=117 // pred_check
              _
            $region120: #{texture_decoder_forward.1} parent=117 // pred_check_branch
              %1253 = sbr.rel (%p1250) target = $region122
            $region121: #{texture_decoder_forward.1} parent=117 // pred_region
              %s1269 = sand.u32 %s1246, 7
              %p1270 = scmp.eq.s32.totalorder %s1269, 0
              // Predicated region
              $region134: #{texture_decoder_forward.1} parent=121 // pred_check
                %p1271 = pneg %p1270
              $region135: #{texture_decoder_forward.1} parent=121 // pred_check_branch
                %1273 = sbr.rel (%p1271) target = $region137
              $region136: #{texture_decoder_forward.1} parent=121 // pred_region
                %s1274 = sshrl.u32 %s1246, 3
                %s1275 = sshrl.u32 %s1274, 5
                // While loop
                $region138: #{texture_decoder_forward.1} parent=136 // loop_pre_header
                  _
                $region139: #{texture_decoder_forward.1} parent=136 // loop_header
                  %s1277 = sphi 0, %s1279
                  %p1278 = scmp.ge.s32.totalorder %s1277, %s1275
                  %s1282 = sphi 0, %s1351
                  %s1283 = sphi %s1234, %s1354
                  %s1284 = sphi %s1245, %s1355
                $region140: #{texture_decoder_forward.1} parent=136 // loop_header_branch
                  %1281 = sbr.rel (%p1278) target = $region144
                $region141: #{texture_decoder_forward.1} parent=136 // loop_body
                  %v1285 = vld [vmem:[%s1283] sm:$0xff]
                  %1286 = vst [vmem:[%s1284] sm:$0xff] %v1285
                  %v1287 = vld [vmem:[%s1283 + $0x8] sm:$0xff]
                  %1288 = vst [vmem:[%s1284 + $0x8] sm:$0xff] %v1287
                  %v1289 = vld [vmem:[%s1283 + $0x10] sm:$0xff]
                  %1290 = vst [vmem:[%s1284 + $0x10] sm:$0xff] %v1289
                  %v1291 = vld [vmem:[%s1283 + $0x18] sm:$0xff]
                  %1292 = vst [vmem:[%s1284 + $0x18] sm:$0xff] %v1291
                  %v1293 = vld [vmem:[%s1283 + $0x20] sm:$0xff]
                  %1294 = vst [vmem:[%s1284 + $0x20] sm:$0xff] %v1293
                  %v1295 = vld [vmem:[%s1283 + $0x28] sm:$0xff]
                  %1296 = vst [vmem:[%s1284 + $0x28] sm:$0xff] %v1295
                  %v1297 = vld [vmem:[%s1283 + $0x30] sm:$0xff]
                  %1298 = vst [vmem:[%s1284 + $0x30] sm:$0xff] %v1297
                  %v1299 = vld [vmem:[%s1283 + $0x38] sm:$0xff]
                  %1300 = vst [vmem:[%s1284 + $0x38] sm:$0xff] %v1299
                  %v1301 = vld [vmem:[%s1283 + $0x40] sm:$0xff]
                  %1302 = vst [vmem:[%s1284 + $0x40] sm:$0xff] %v1301
                  %v1303 = vld [vmem:[%s1283 + $0x48] sm:$0xff]
                  %1304 = vst [vmem:[%s1284 + $0x48] sm:$0xff] %v1303
                  %v1305 = vld [vmem:[%s1283 + $0x50] sm:$0xff]
                  %1306 = vst [vmem:[%s1284 + $0x50] sm:$0xff] %v1305
                  %v1307 = vld [vmem:[%s1283 + $0x58] sm:$0xff]
                  %1308 = vst [vmem:[%s1284 + $0x58] sm:$0xff] %v1307
                  %v1309 = vld [vmem:[%s1283 + $0x60] sm:$0xff]
                  %1310 = vst [vmem:[%s1284 + $0x60] sm:$0xff] %v1309
                  %v1311 = vld [vmem:[%s1283 + $0x68] sm:$0xff]
                  %1312 = vst [vmem:[%s1284 + $0x68] sm:$0xff] %v1311
                  %v1313 = vld [vmem:[%s1283 + $0x70] sm:$0xff]
                  %1314 = vst [vmem:[%s1284 + $0x70] sm:$0xff] %v1313
                  %v1315 = vld [vmem:[%s1283 + $0x78] sm:$0xff]
                  %1316 = vst [vmem:[%s1284 + $0x78] sm:$0xff] %v1315
                  %v1317 = vld [vmem:[%s1283 + $0x80] sm:$0xff]
                  %1318 = vst [vmem:[%s1284 + $0x80] sm:$0xff] %v1317
                  %v1319 = vld [vmem:[%s1283 + $0x88] sm:$0xff]
                  %1320 = vst [vmem:[%s1284 + $0x88] sm:$0xff] %v1319
                  %v1321 = vld [vmem:[%s1283 + $0x90] sm:$0xff]
                  %1322 = vst [vmem:[%s1284 + $0x90] sm:$0xff] %v1321
                  %v1323 = vld [vmem:[%s1283 + $0x98] sm:$0xff]
                  %1324 = vst [vmem:[%s1284 + $0x98] sm:$0xff] %v1323
                  %v1325 = vld [vmem:[%s1283 + $0xa0] sm:$0xff]
                  %1326 = vst [vmem:[%s1284 + $0xa0] sm:$0xff] %v1325
                  %v1327 = vld [vmem:[%s1283 + $0xa8] sm:$0xff]
                  %1328 = vst [vmem:[%s1284 + $0xa8] sm:$0xff] %v1327
                  %v1329 = vld [vmem:[%s1283 + $0xb0] sm:$0xff]
                  %1330 = vst [vmem:[%s1284 + $0xb0] sm:$0xff] %v1329
                  %v1331 = vld [vmem:[%s1283 + $0xb8] sm:$0xff]
                  %1332 = vst [vmem:[%s1284 + $0xb8] sm:$0xff] %v1331
                  %v1333 = vld [vmem:[%s1283 + $0xc0] sm:$0xff]
                  %1334 = vst [vmem:[%s1284 + $0xc0] sm:$0xff] %v1333
                  %v1335 = vld [vmem:[%s1283 + $0xc8] sm:$0xff]
                  %1336 = vst [vmem:[%s1284 + $0xc8] sm:$0xff] %v1335
                  %v1337 = vld [vmem:[%s1283 + $0xd0] sm:$0xff]
                  %1338 = vst [vmem:[%s1284 + $0xd0] sm:$0xff] %v1337
                  %v1339 = vld [vmem:[%s1283 + $0xd8] sm:$0xff]
                  %1340 = vst [vmem:[%s1284 + $0xd8] sm:$0xff] %v1339
                  %v1341 = vld [vmem:[%s1283 + $0xe0] sm:$0xff]
                  %1342 = vst [vmem:[%s1284 + $0xe0] sm:$0xff] %v1341
                  %v1343 = vld [vmem:[%s1283 + $0xe8] sm:$0xff]
                  %1344 = vst [vmem:[%s1284 + $0xe8] sm:$0xff] %v1343
                  %v1345 = vld [vmem:[%s1283 + $0xf0] sm:$0xff]
                  %1346 = vst [vmem:[%s1284 + $0xf0] sm:$0xff] %v1345
                  %v1347 = vld [vmem:[%s1283 + $0xf8] sm:$0xff]
                  %1348 = vst [vmem:[%s1284 + $0xf8] sm:$0xff] %v1347
                  %s1349 = sadd.s32 1, %s1282
                  %p1350 = scmp.ge.s32.totalorder %s1349, %s1275
                  %s1351 = scalar_select %p1350, 0, %s1349
                  %s1352 = smul.u32 %s1351, 256
                  %s1353 = smul.u32 %s1351, 256
                  %s1354 = scalar_lea.vmem %s1234, %s1352 [#allocation3]
                  %s1355 = scalar_lea.vmem %s1245, %s1353
                $region142: #{texture_decoder_forward.1} parent=136 // loop_footer
                  %s1279 = sadd.s32 %s1277, 1
                $region143: #{texture_decoder_forward.1} parent=136 // loop_footer_branch
                  %1276 = sbr.rel target = $region139
                $region144: #{texture_decoder_forward.1} parent=136 // loop_exit
                  _
                %s1356 = sshrl.u32 %s1274, 5
                %s1357 = sand.u32 %s1274, 31
                %s1358 = smul.u32 %s1356, 32
                %s1359 = smul.u32 8, %s1358
                %s1360 = scalar_lea.vmem %s1234, %s1359 [#allocation3]
                %s1361 = smul.u32 8, %s1358
                %s1362 = scalar_lea.vmem %s1245, %s1361
                // While loop
                $region145: #{texture_decoder_forward.1} parent=136 // loop_pre_header
                  _
                $region146: #{texture_decoder_forward.1} parent=136 // loop_header
                  %s1364 = sphi 0, %s1366
                  %p1365 = scmp.ge.s32.totalorder %s1364, %s1357
                  %s1369 = sphi 0, %s1376
                  %s1370 = sphi %s1360, %s1379
                  %s1371 = sphi %s1362, %s1380
                $region147: #{texture_decoder_forward.1} parent=136 // loop_header_branch
                  %1368 = sbr.rel (%p1365) target = $region151
                $region148: #{texture_decoder_forward.1} parent=136 // loop_body
                  %v1372 = vld [vmem:[%s1370] sm:$0xff]
                  %1373 = vst [vmem:[%s1371] sm:$0xff] %v1372
                  %s1374 = sadd.s32 1, %s1369
                  %p1375 = scmp.ge.s32.totalorder %s1374, %s1357
                  %s1376 = scalar_select %p1375, 0, %s1374
                  %s1377 = smul.u32 %s1376, 8
                  %s1378 = smul.u32 %s1376, 8
                  %s1379 = scalar_lea.vmem %s1360, %s1377 [#allocation3]
                  %s1380 = scalar_lea.vmem %s1362, %s1378
                $region149: #{texture_decoder_forward.1} parent=136 // loop_footer
                  %s1366 = sadd.s32 %s1364, 1
                $region150: #{texture_decoder_forward.1} parent=136 // loop_footer_branch
                  %1363 = sbr.rel target = $region146
                $region151: #{texture_decoder_forward.1} parent=136 // loop_exit
                  _
              $region137: #{texture_decoder_forward.1} parent=121 // pred_fallthru
                _
              %p1381 = pneg %p1270
              // Predicated region
              $region152: #{texture_decoder_forward.1} parent=121 // pred_check
                _
              $region153: #{texture_decoder_forward.1} parent=121 // pred_check_branch
                %1383 = sbr.rel (%p1270) target = $region155
              $region154: #{texture_decoder_forward.1} parent=121 // pred_region
                %s1384 = sand.u32 %s1246, 7
                %s1385 = ssub.s32 %s1246, %s1384
                %s1386 = scalar_lea.vmem %s1234, %s1385 [#allocation3]
                %s1387 = ssub.s32 %s1246, %s1384
                %s1388 = scalar_lea.vmem %s1245, %s1387
                %s1389 = sshrl.u32 %s1246, 3
                %s1390 = sshrl.u32 %s1389, 5
                // While loop
                $region156: #{texture_decoder_forward.1} parent=154 // loop_pre_header
                  _
                $region157: #{texture_decoder_forward.1} parent=154 // loop_header
                  %s1392 = sphi 0, %s1394
                  %p1393 = scmp.ge.s32.totalorder %s1392, %s1390
                  %s1397 = sphi 0, %s1466
                  %s1398 = sphi %s1234, %s1469
                  %s1399 = sphi %s1245, %s1470
                $region158: #{texture_decoder_forward.1} parent=154 // loop_header_branch
                  %1396 = sbr.rel (%p1393) target = $region162
                $region159: #{texture_decoder_forward.1} parent=154 // loop_body
                  %v1400 = vld [vmem:[%s1398] sm:$0xff]
                  %1401 = vst [vmem:[%s1399] sm:$0xff] %v1400
                  %v1402 = vld [vmem:[%s1398 + $0x8] sm:$0xff]
                  %1403 = vst [vmem:[%s1399 + $0x8] sm:$0xff] %v1402
                  %v1404 = vld [vmem:[%s1398 + $0x10] sm:$0xff]
                  %1405 = vst [vmem:[%s1399 + $0x10] sm:$0xff] %v1404
                  %v1406 = vld [vmem:[%s1398 + $0x18] sm:$0xff]
                  %1407 = vst [vmem:[%s1399 + $0x18] sm:$0xff] %v1406
                  %v1408 = vld [vmem:[%s1398 + $0x20] sm:$0xff]
                  %1409 = vst [vmem:[%s1399 + $0x20] sm:$0xff] %v1408
                  %v1410 = vld [vmem:[%s1398 + $0x28] sm:$0xff]
                  %1411 = vst [vmem:[%s1399 + $0x28] sm:$0xff] %v1410
                  %v1412 = vld [vmem:[%s1398 + $0x30] sm:$0xff]
                  %1413 = vst [vmem:[%s1399 + $0x30] sm:$0xff] %v1412
                  %v1414 = vld [vmem:[%s1398 + $0x38] sm:$0xff]
                  %1415 = vst [vmem:[%s1399 + $0x38] sm:$0xff] %v1414
                  %v1416 = vld [vmem:[%s1398 + $0x40] sm:$0xff]
                  %1417 = vst [vmem:[%s1399 + $0x40] sm:$0xff] %v1416
                  %v1418 = vld [vmem:[%s1398 + $0x48] sm:$0xff]
                  %1419 = vst [vmem:[%s1399 + $0x48] sm:$0xff] %v1418
                  %v1420 = vld [vmem:[%s1398 + $0x50] sm:$0xff]
                  %1421 = vst [vmem:[%s1399 + $0x50] sm:$0xff] %v1420
                  %v1422 = vld [vmem:[%s1398 + $0x58] sm:$0xff]
                  %1423 = vst [vmem:[%s1399 + $0x58] sm:$0xff] %v1422
                  %v1424 = vld [vmem:[%s1398 + $0x60] sm:$0xff]
                  %1425 = vst [vmem:[%s1399 + $0x60] sm:$0xff] %v1424
                  %v1426 = vld [vmem:[%s1398 + $0x68] sm:$0xff]
                  %1427 = vst [vmem:[%s1399 + $0x68] sm:$0xff] %v1426
                  %v1428 = vld [vmem:[%s1398 + $0x70] sm:$0xff]
                  %1429 = vst [vmem:[%s1399 + $0x70] sm:$0xff] %v1428
                  %v1430 = vld [vmem:[%s1398 + $0x78] sm:$0xff]
                  %1431 = vst [vmem:[%s1399 + $0x78] sm:$0xff] %v1430
                  %v1432 = vld [vmem:[%s1398 + $0x80] sm:$0xff]
                  %1433 = vst [vmem:[%s1399 + $0x80] sm:$0xff] %v1432
                  %v1434 = vld [vmem:[%s1398 + $0x88] sm:$0xff]
                  %1435 = vst [vmem:[%s1399 + $0x88] sm:$0xff] %v1434
                  %v1436 = vld [vmem:[%s1398 + $0x90] sm:$0xff]
                  %1437 = vst [vmem:[%s1399 + $0x90] sm:$0xff] %v1436
                  %v1438 = vld [vmem:[%s1398 + $0x98] sm:$0xff]
                  %1439 = vst [vmem:[%s1399 + $0x98] sm:$0xff] %v1438
                  %v1440 = vld [vmem:[%s1398 + $0xa0] sm:$0xff]
                  %1441 = vst [vmem:[%s1399 + $0xa0] sm:$0xff] %v1440
                  %v1442 = vld [vmem:[%s1398 + $0xa8] sm:$0xff]
                  %1443 = vst [vmem:[%s1399 + $0xa8] sm:$0xff] %v1442
                  %v1444 = vld [vmem:[%s1398 + $0xb0] sm:$0xff]
                  %1445 = vst [vmem:[%s1399 + $0xb0] sm:$0xff] %v1444
                  %v1446 = vld [vmem:[%s1398 + $0xb8] sm:$0xff]
                  %1447 = vst [vmem:[%s1399 + $0xb8] sm:$0xff] %v1446
                  %v1448 = vld [vmem:[%s1398 + $0xc0] sm:$0xff]
                  %1449 = vst [vmem:[%s1399 + $0xc0] sm:$0xff] %v1448
                  %v1450 = vld [vmem:[%s1398 + $0xc8] sm:$0xff]
                  %1451 = vst [vmem:[%s1399 + $0xc8] sm:$0xff] %v1450
                  %v1452 = vld [vmem:[%s1398 + $0xd0] sm:$0xff]
                  %1453 = vst [vmem:[%s1399 + $0xd0] sm:$0xff] %v1452
                  %v1454 = vld [vmem:[%s1398 + $0xd8] sm:$0xff]
                  %1455 = vst [vmem:[%s1399 + $0xd8] sm:$0xff] %v1454
                  %v1456 = vld [vmem:[%s1398 + $0xe0] sm:$0xff]
                  %1457 = vst [vmem:[%s1399 + $0xe0] sm:$0xff] %v1456
                  %v1458 = vld [vmem:[%s1398 + $0xe8] sm:$0xff]
                  %1459 = vst [vmem:[%s1399 + $0xe8] sm:$0xff] %v1458
                  %v1460 = vld [vmem:[%s1398 + $0xf0] sm:$0xff]
                  %1461 = vst [vmem:[%s1399 + $0xf0] sm:$0xff] %v1460
                  %v1462 = vld [vmem:[%s1398 + $0xf8] sm:$0xff]
                  %1463 = vst [vmem:[%s1399 + $0xf8] sm:$0xff] %v1462
                  %s1464 = sadd.s32 1, %s1397
                  %p1465 = scmp.ge.s32.totalorder %s1464, %s1390
                  %s1466 = scalar_select %p1465, 0, %s1464
                  %s1467 = smul.u32 %s1466, 256
                  %s1468 = smul.u32 %s1466, 256
                  %s1469 = scalar_lea.vmem %s1234, %s1467 [#allocation3]
                  %s1470 = scalar_lea.vmem %s1245, %s1468
                $region160: #{texture_decoder_forward.1} parent=154 // loop_footer
                  %s1394 = sadd.s32 %s1392, 1
                $region161: #{texture_decoder_forward.1} parent=154 // loop_footer_branch
                  %1391 = sbr.rel target = $region157
                $region162: #{texture_decoder_forward.1} parent=154 // loop_exit
                  _
                %s1471 = sshrl.u32 %s1389, 5
                %s1472 = sand.u32 %s1389, 31
                %s1473 = smul.u32 %s1471, 32
                %s1474 = smul.u32 8, %s1473
                %s1475 = scalar_lea.vmem %s1234, %s1474 [#allocation3]
                %s1476 = smul.u32 8, %s1473
                %s1477 = scalar_lea.vmem %s1245, %s1476
                // While loop
                $region163: #{texture_decoder_forward.1} parent=154 // loop_pre_header
                  _
                $region164: #{texture_decoder_forward.1} parent=154 // loop_header
                  %s1479 = sphi 0, %s1481
                  %p1480 = scmp.ge.s32.totalorder %s1479, %s1472
                  %s1484 = sphi 0, %s1491
                  %s1485 = sphi %s1475, %s1494
                  %s1486 = sphi %s1477, %s1495
                $region165: #{texture_decoder_forward.1} parent=154 // loop_header_branch
                  %1483 = sbr.rel (%p1480) target = $region169
                $region166: #{texture_decoder_forward.1} parent=154 // loop_body
                  %v1487 = vld [vmem:[%s1485] sm:$0xff]
                  %1488 = vst [vmem:[%s1486] sm:$0xff] %v1487
                  %s1489 = sadd.s32 1, %s1484
                  %p1490 = scmp.ge.s32.totalorder %s1489, %s1472
                  %s1491 = scalar_select %p1490, 0, %s1489
                  %s1492 = smul.u32 %s1491, 8
                  %s1493 = smul.u32 %s1491, 8
                  %s1494 = scalar_lea.vmem %s1475, %s1492 [#allocation3]
                  %s1495 = scalar_lea.vmem %s1477, %s1493
                $region167: #{texture_decoder_forward.1} parent=154 // loop_footer
                  %s1481 = sadd.s32 %s1479, 1
                $region168: #{texture_decoder_forward.1} parent=154 // loop_footer_branch
                  %1478 = sbr.rel target = $region164
                $region169: #{texture_decoder_forward.1} parent=154 // loop_exit
                  _
                %s1496 = sshll.u32 1, %s1384
                %s1497 = ssub.s32 %s1496, 1
                loop: start=0, step=1, limit=1
                $region170: #{texture_decoder_forward.1} parent=154 // loop_pre_header
                  _
                $region171: #{texture_decoder_forward.1} parent=154 // loop_header
                  %s1499 = sphi 0, %s1503
                  %p1500 = scmp.ge.s32.totalorder %s1499, 1
                  %s1504 = sphi %s1386, %s1386
                  %s1505 = sphi %s1388, %s1388
                $region172: #{texture_decoder_forward.1} parent=154 // loop_header_branch
                  %1502 = sbr.rel (%p1500) target = $region176
                $region173: #{texture_decoder_forward.1} parent=154 // loop_body
                  %v1506 = vld [vmem:[%s1504] sm:%s1497]
                  %1507 = vst [vmem:[%s1505] sm:%s1497] %v1506
                $region174: #{texture_decoder_forward.1} parent=154 // loop_footer
                  %s1503 = sadd.s32 1, %s1499
                $region175: #{texture_decoder_forward.1} parent=154 // loop_footer_branch
                  %1498 = sbr.rel target = $region171
                $region176: #{texture_decoder_forward.1} parent=154 // loop_exit
                  _
              $region155: #{texture_decoder_forward.1} parent=121 // pred_fallthru
                _
            $region122: #{texture_decoder_forward.1} parent=117 // pred_fallthru
              _
            // Predicated region
            $region123: #{texture_decoder_forward.1} parent=117 // pred_check
              %p1254 = pneg %p1250
            $region124: #{texture_decoder_forward.1} parent=117 // pred_check_branch
              %1256 = sbr.rel (%p1254) target = $region126
            $region125: #{texture_decoder_forward.1} parent=117 // pred_region
              %s1257 = sshll.u32 1, %s1246
              %s1258 = ssub.s32 %s1257, 1
              loop: start=0, step=1, limit=1
              $region127: #{texture_decoder_forward.1} parent=125 // loop_pre_header
                _
              $region128: #{texture_decoder_forward.1} parent=125 // loop_header
                %s1260 = sphi 0, %s1264
                %p1261 = scmp.ge.s32.totalorder %s1260, 1
                %s1265 = sphi %s1234, %s1234
                %s1266 = sphi %s1245, %s1245
              $region129: #{texture_decoder_forward.1} parent=125 // loop_header_branch
                %1263 = sbr.rel (%p1261) target = $region133
              $region130: #{texture_decoder_forward.1} parent=125 // loop_body
                %v1267 = vld [vmem:[%s1265] sm:%s1258]
                %1268 = vst [vmem:[%s1266] sm:%s1258] %v1267
              $region131: #{texture_decoder_forward.1} parent=125 // loop_footer
                %s1264 = sadd.s32 1, %s1260
              $region132: #{texture_decoder_forward.1} parent=125 // loop_footer_branch
                %1259 = sbr.rel target = $region128
              $region133: #{texture_decoder_forward.1} parent=125 // loop_exit
                _
            $region126: #{texture_decoder_forward.1} parent=117 // pred_fallthru
              _
          $region118: #{texture_decoder_forward.1} parent=113 // pred_fallthru
            _
          %1508 = vnop
        $region114: #{texture_decoder_forward.1} parent=105 // pred_fallthru
          _
      $region106: #{texture_decoder_forward.1} parent=5 // pred_fallthru
        _
      %p1509 = scmp.le.s32.totalorder 2, %s12
      // Predicated region
      $region177: #{texture_decoder_forward.1} parent=5 // pred_check
        %p1510 = pneg %p1509
      $region178: #{texture_decoder_forward.1} parent=5 // pred_check_branch
        %1512 = sbr.rel (%p1510) target = $region180
      $region179: #{texture_decoder_forward.1} parent=5 // pred_region
        %s1513 = ssub.s32 %s12, 2
        // Predicated region
        $region181: #{texture_decoder_forward.1} parent=179 // pred_check
          %p1514 = pneg %p172
        $region182: #{texture_decoder_forward.1} parent=179 // pred_check_branch
          %1516 = sbr.rel (%p1514) target = $region184
        $region183: #{texture_decoder_forward.1} parent=179 // pred_region
          %s1517 = sand.u32 %s157, 1
          %s1518 = sand.u32 %s157, 1
          %s1519 = smul.addr %s1518, 8
          %s1520 = scalar_lea.vmem [#allocation3], %s1519
        $region184: #{texture_decoder_forward.1} parent=179 // pred_fallthru
          _
      $region180: #{texture_decoder_forward.1} parent=5 // pred_fallthru
        _
    $region6: #{texture_decoder_forward.1} parent=1 // loop_footer
      %s16 = sadd.s32 1, %s12
    $region7: #{texture_decoder_forward.1} parent=1 // loop_footer_branch
      %11 = sbr.rel target = $region3
    $region8: #{texture_decoder_forward.1} parent=1 // loop_exit
      _

</llo_original>
